<compile_context>
chip_gen: v5e
topology: v5e:2x2
jax: 0.10.0
libtpu: 0.0.40
codegen_flags: <defaults>
</compile_context>

<pallas_src>
import functools
import math

import jax
import jax.numpy as jnp
from jax.experimental import pallas as pl
from jax.experimental.pallas import tpu as pltpu


# ----------------------------------------------------------------------------
# Kernel A: fused Q/K/V projection (q pre-scaled), bf16 outputs.
# ----------------------------------------------------------------------------
def _qkv_proj_kernel(x_ref, wqkv_ref, bqkv_ref, q_ref, k_ref, v_ref, *, head_dim):
    D = x_ref.shape[-1]
    x_bf = x_ref[0].astype(jnp.bfloat16)                       # (ts, D)
    qkv = jnp.dot(x_bf, wqkv_ref[...],
                  preferred_element_type=jnp.float32) + bqkv_ref[...]   # (ts, 3D) f32
    inv_sqrt_hd = 1.0 / math.sqrt(head_dim)
    q_ref[0] = (qkv[:, 0 * D:1 * D] * inv_sqrt_hd).astype(q_ref.dtype)
    k_ref[0] = qkv[:, 1 * D:2 * D].astype(k_ref.dtype)
    v_ref[0] = qkv[:, 2 * D:3 * D].astype(v_ref.dtype)


# ----------------------------------------------------------------------------
# Kernel B: flash attention + output projection + residual + LayerNorm.
# ----------------------------------------------------------------------------
def _flash_attn_kernel(xq_ref, q_ref, k_ref, v_ref, wo_ref, bo_ref, gamma_ref,
                       beta_ref, o_ref, qh_ref, m_ref, l_ref, acc_ref,
                       *, num_heads, head_dim, eps):
    H, hd = num_heads, head_dim
    ki = pl.program_id(2)

    def split_heads(t):
        # (t, D) -> (H, t, hd) via static lane slices (whole-vreg picks when
        # hd % 128 == 0); operates on a single tile, not the full sequence.
        return jnp.stack([t[:, h * hd:(h + 1) * hd] for h in range(H)], axis=0)

    @pl.when(ki == 0)
    def _init():
        qh_ref[...] = split_heads(q_ref[0])                    # (H, tq, hd) bf16
        m_ref[...] = jnp.full(m_ref.shape, -jnp.inf, m_ref.dtype)
        l_ref[...] = jnp.zeros(l_ref.shape, l_ref.dtype)
        acc_ref[...] = jnp.zeros(acc_ref.shape, acc_ref.dtype)

    kh = split_heads(k_ref[0])                                 # (H, tk, hd) bf16
    vh = split_heads(v_ref[0])                                 # (H, tk, hd) bf16

    # Scores for this (q-tile, kv-tile) pair; q was pre-scaled in kernel A.
    s = jnp.einsum("hqd,hkd->hqk", qh_ref[...], kh,
                   preferred_element_type=jnp.float32)         # (H, tq, tk) f32

    m_prev = m_ref[...]
    m_new = jnp.maximum(m_prev, jnp.max(s, axis=-1, keepdims=True))
    alpha = jnp.exp(m_prev - m_new)
    p = jnp.exp(s - m_new)                                     # unnormalized, <= 1
    l_ref[...] = alpha * l_ref[...] + jnp.sum(p, axis=-1, keepdims=True)
    acc_ref[...] = alpha * acc_ref[...] + jnp.einsum(
        "hqk,hkd->hqd", p.astype(jnp.bfloat16), vh,
        preferred_element_type=jnp.float32)
    m_ref[...] = m_new

    @pl.when(ki == pl.num_programs(2) - 1)
    def _finalize():
        # Deferred softmax normalization: one multiply over (H, tq, hd).
        ctx = acc_ref[...] * pl.reciprocal(l_ref[...], approx=True)
        # Merge heads on the lane axis, then one K=D output projection.
        ctx2d = jnp.concatenate([ctx[h] for h in range(H)], axis=-1)   # (tq, D) f32
        out = jnp.dot(ctx2d.astype(jnp.bfloat16), wo_ref[...],
                      preferred_element_type=jnp.float32) + bo_ref[...]
        # Residual + LayerNorm (single-pass statistics, f32, eps = PyTorch 1e-5).
        y = out + xq_ref[0].astype(jnp.float32)
        mu = jnp.mean(y, axis=-1, keepdims=True)
        var = jnp.mean(y * y, axis=-1, keepdims=True) - mu * mu
        y_norm = (y - mu) * jax.lax.rsqrt(var + eps)
        o_ref[0] = (y_norm * gamma_ref[...] + beta_ref[...]).astype(o_ref.dtype)


# ----------------------------------------------------------------------------
# Wrappers.
# ----------------------------------------------------------------------------
def _const_spec(shape):
    """BlockSpec for a grid-invariant parameter (same block every grid step)."""
    return pl.BlockSpec(shape, lambda *_: (0,) * len(shape))


def _clamp_vmem(estimate_bytes):
    # Explicit budget instead of the default scoped limit; capped at 64 MiB so
    # the same setting is valid on v7x (64 MiB physical VMEM per TensorCore).
    return int(min(64 * 1024 * 1024, max(32 * 1024 * 1024, 2 * estimate_bytes)))


def _qkv_projection(x, fp, *, head_dim, seq_tile):
    B, S, D = x.shape
    kernel = functools.partial(_qkv_proj_kernel, head_dim=head_dim)
    out = jax.ShapeDtypeStruct((B, S, D), jnp.bfloat16)

    est = (2 * (seq_tile * D * 4 + 3 * seq_tile * D * 2)       # x + q/k/v blocks (x2 buf)
           + 2 * (D * 3 * D * 2 + 3 * D * 4)                   # Wqkv bf16 + bias
           + 2 * seq_tile * 3 * D * 4)                         # f32 qkv temporaries

    act_spec = pl.BlockSpec((1, seq_tile, D), lambda b, s: (b, s, 0))
    return pl.pallas_call(
        kernel,
        out_shape=(out, out, out),
        grid_spec=pltpu.PrefetchScalarGridSpec(
            num_scalar_prefetch=0,
            grid=(B, S // seq_tile),
            in_specs=[
                act_spec,                       # x
                _const_spec((D, 3 * D)),        # Wqkv (bf16)
                _const_spec((1, 3 * D)),        # bqkv (f32)
            ],
            out_specs=[act_spec, act_spec, act_spec],
        ),
        compiler_params=pltpu.CompilerParams(
            dimension_semantics=("parallel", "parallel"),
            vmem_limit_bytes=_clamp_vmem(est)),
    )(x, fp["wqkv"], fp["bqkv"])


def _flash_attention(x, q, k, v, fp, *, num_heads, head_dim, q_tile, kv_tile,
                     eps=1e-5):
    B, S, D = x.shape
    H, hd = num_heads, head_dim
    kernel = functools.partial(_flash_attn_kernel, num_heads=H, head_dim=hd,
                               eps=eps)

    est = (2 * (2 * q_tile * D * 4 + q_tile * D * 2 + 2 * kv_tile * D * 2)  # x/out/q/k/v blocks
           + 2 * (D * D * 2 + 3 * D * 4)                                    # Wo + bo/gamma/beta
           + H * q_tile * hd * (2 + 4) + 2 * H * q_tile * 128 * 4           # qh/acc + m/l (lane-padded)
           + H * q_tile * kv_tile * (4 + 4 + 2)                             # s, p, p_bf16 temporaries
           + 4 * q_tile * D * 4)                                            # finalize temporaries

    q_spec = pl.BlockSpec((1, q_tile, D), lambda b, qi, ki: (b, qi, 0))
    kv_spec = pl.BlockSpec((1, kv_tile, D), lambda b, qi, ki: (b, ki, 0))

    return pl.pallas_call(
        kernel,
        out_shape=jax.ShapeDtypeStruct((B, S, D), x.dtype),
        grid_spec=pltpu.PrefetchScalarGridSpec(
            num_scalar_prefetch=0,
            grid=(B, S // q_tile, S // kv_tile),
            in_specs=[
                q_spec,                         # x (f32, residual path)
                q_spec,                         # q (bf16, pre-scaled)
                kv_spec,                        # k (bf16)
                kv_spec,                        # v (bf16)
                _const_spec((D, D)),            # Wo (bf16)
                _const_spec((1, D)),            # bo
                _const_spec((1, D)),            # gamma
                _const_spec((1, D)),            # beta
            ],
            out_specs=q_spec,
            scratch_shapes=[
                pltpu.VMEM((H, q_tile, hd), jnp.bfloat16),   # qh
                pltpu.VMEM((H, q_tile, 1), jnp.float32),     # running max m
                pltpu.VMEM((H, q_tile, 1), jnp.float32),     # running denom l
                pltpu.VMEM((H, q_tile, hd), jnp.float32),    # context accumulator
            ],
        ),
        compiler_params=pltpu.CompilerParams(
            dimension_semantics=("parallel", "parallel", "arbitrary"),
            vmem_limit_bytes=_clamp_vmem(est)),
    )(x, q, k, v, fp["wo"], fp["bo"], fp["gamma"], fp["beta"])


@functools.partial(jax.jit,
                   static_argnames=("num_heads", "q_tile", "kv_tile", "proj_tile"))
def multi_head_attention_forward(x, fused_params, *, num_heads, q_tile=128,
                                 kv_tile=128, proj_tile=256):
    """x: (B, S, D) float32.  fused_params: see fuse_params()."""
    B, S, D = x.shape
    assert D % num_heads == 0, "attention_dim must be divisible by num_heads"
    head_dim = D // num_heads

    ts = min(proj_tile, S)
    tq = min(q_tile, S)
    tk = min(kv_tile, S)
    assert S % ts == 0 and S % tq == 0 and S % tk == 0, \
        "seq_len must be divisible by the tile sizes"

    q, k, v = _qkv_projection(x, fused_params, head_dim=head_dim, seq_tile=ts)
    return _flash_attention(x, q, k, v, fused_params, num_heads=num_heads,
                            head_dim=head_dim, q_tile=tq, kv_tile=tk)


# ----------------------------------------------------------------------------
# Parameters / reference.
# ----------------------------------------------------------------------------
def init_params(key, attention_dim: int):
    """Deterministic synthetic parameters (nn.Linear-style uniform init), f32."""
    D = attention_dim
    bound = 1.0 / math.sqrt(D)
    keys = jax.random.split(key, 8)
    u = lambda k, shape: jax.random.uniform(k, shape, jnp.float32, -bound, bound)
    return {
        "wq": u(keys[0], (D, D)), "bq": u(keys[1], (1, D)),
        "wk": u(keys[2], (D, D)), "bk": u(keys[3], (1, D)),
        "wv": u(keys[4], (D, D)), "bv": u(keys[5], (1, D)),
        "wo": u(keys[6], (D, D)), "bo": u(keys[7], (1, D)),
        "gamma": jnp.ones((1, D), jnp.float32),
        "beta": jnp.zeros((1, D), jnp.float32),
    }


def fuse_params(params):
    """One-time host-side weight fusion / bf16 cast for the kernels."""
    wqkv = jnp.concatenate([params["wq"], params["wk"], params["wv"]], axis=1)
    bqkv = jnp.concatenate([params["bq"], params["bk"], params["bv"]], axis=1)
    return {
        "wqkv": wqkv.astype(jnp.bfloat16),      # (D, 3D)
        "bqkv": bqkv,                           # (1, 3D) f32
        "wo": params["wo"].astype(jnp.bfloat16),
        "bo": params["bo"],
        "gamma": params["gamma"],
        "beta": params["beta"],
    }


def reference_forward(x, params, *, num_heads):
    """Pure-JAX f32 reference mirroring the PyTorch forward (mask=None, eval)."""
    B, S, D = x.shape
    hd = D // num_heads
    q = x @ params["wq"] + params["bq"]
    k = x @ params["wk"] + params["bk"]
    v = x @ params["wv"] + params["bv"]
    q = q.reshape(B, S, num_heads, hd).transpose(0, 2, 1, 3)
    k = k.reshape(B, S, num_heads, hd).transpose(0, 2, 1, 3)
    v = v.reshape(B, S, num_heads, hd).transpose(0, 2, 1, 3)
    scores = jnp.einsum("bhqd,bhkd->bhqk", q, k) / math.sqrt(hd)
    w = jax.nn.softmax(scores, axis=-1)
    att = jnp.einsum("bhqk,bhkd->bhqd", w, v)
    att = att.transpose(0, 2, 1, 3).reshape(B, S, D)
    out = att @ params["wo"] + params["bo"]
    y = out + x
    mu = jnp.mean(y, axis=-1, keepdims=True)
    var = jnp.mean((y - mu) ** 2, axis=-1, keepdims=True)
    return (y - mu) * jax.lax.rsqrt(var + 1e-5) * params["gamma"] + params["beta"]


if __name__ == "__main__":
    B, S, D, H = 2, 8, 32, 4   # batch, seq, attention_dim, num_heads (head_dim=8)

    key = jax.random.PRNGKey(0)
    k_x, k_p = jax.random.split(key)
    x = jax.random.normal(k_x, (B, S, D), dtype=jnp.float32)
    params = init_params(k_p, D)
    fused = fuse_params(params)

    out = multi_head_attention_forward(x, fused, num_heads=H)
    out = jax.block_until_ready(out)

    ref = reference_forward(x, params, num_heads=H)
    assert out.shape == (B, S, D)
    # bf16 MXU operands / bf16 q,k,v intermediates + approx reciprocal loosen
    # numerics vs the f32 reference.
    max_diff = float(jnp.max(jnp.abs(out - ref)))
    assert jnp.allclose(out, ref, atol=5e-2, rtol=5e-2), (
        f"mismatch vs reference: max|diff|={max_diff}")

    print("KERNEL_OK")
</pallas_src>

<mosaic_0001>
module attributes {stable_mosaic.version = 11 : i64} {
  func.func @_qkv_proj_kernel(%arg0: i32, %arg1: i32, %arg2: memref<1x8x32xf32, #tpu.memory_space<vmem>>, %arg3: memref<32x96xbf16, #tpu.memory_space<vmem>>, %arg4: memref<1x96xf32, #tpu.memory_space<vmem>>, %arg5: memref<1x8x32xbf16, #tpu.memory_space<vmem>>, %arg6: memref<1x8x32xbf16, #tpu.memory_space<vmem>>, %arg7: memref<1x8x32xbf16, #tpu.memory_space<vmem>>) attributes {dimension_semantics = [#tpu.dimension_semantics<parallel>, #tpu.dimension_semantics<parallel>], iteration_bounds = array<i64: 2, 1>, scalar_prefetch = 0 : i64, scratch_operands = 0 : i64, tpu.core_type = #tpu.core_type<tc>, window_params = [{transform_indices = @transform_0, window_bounds = array<i64: 1, 8, 32>}, {pipeline_mode = #tpu.pipeline_mode<synchronous>, transform_indices = @transform_1, window_bounds = array<i64: 32, 96>}, {pipeline_mode = #tpu.pipeline_mode<synchronous>, transform_indices = @transform_2, window_bounds = array<i64: 1, 96>}, {transform_indices = @transform_3, window_bounds = array<i64: 1, 8, 32>}, {transform_indices = @transform_4, window_bounds = array<i64: 1, 8, 32>}, {transform_indices = @transform_5, window_bounds = array<i64: 1, 8, 32>}]} {
    %c0 = arith.constant 0 : index
    %c0_0 = arith.constant 0 : index
    %c0_1 = arith.constant 0 : index
    %0 = vector.load %arg2[%c0, %c0_0, %c0_1] : memref<1x8x32xf32, #tpu.memory_space<vmem>>, vector<1x8x32xf32>
    %1 = vector.shape_cast %0 : vector<1x8x32xf32> to vector<8x32xf32>
    %2 = arith.truncf %1 : vector<8x32xf32> to vector<8x32xbf16>
    %c0_2 = arith.constant 0 : index
    %c0_3 = arith.constant 0 : index
    %3 = vector.load %arg3[%c0_2, %c0_3] : memref<32x96xbf16, #tpu.memory_space<vmem>>, vector<32x96xbf16>
    %cst = arith.constant dense<0.000000e+00> : vector<8x96xf32>
    %4 = tpu.matmul %2, %3, %cst {dimension_numbers = #tpu.dot_dimension_numbers<[1], [0], [0], [1], [0, 0, 1, 1], [], []>} : vector<8x32xbf16>, vector<32x96xbf16>, vector<8x96xf32> -> vector<8x96xf32>
    %c0_4 = arith.constant 0 : index
    %c0_5 = arith.constant 0 : index
    %5 = vector.load %arg4[%c0_4, %c0_5] : memref<1x96xf32, #tpu.memory_space<vmem>>, vector<1x96xf32>
    %6 = vector.broadcast %5 : vector<1x96xf32> to vector<8x96xf32>
    %7 = arith.addf %4, %6 : vector<8x96xf32>
    %8 = vector.extract_strided_slice %7 {offsets = [0, 0], sizes = [8, 32], strides = [1, 1]} : vector<8x96xf32> to vector<8x32xf32>
    %cst_6 = arith.constant 0.353553385 : f32
    %9 = vector.broadcast %cst_6 : f32 to vector<8x32xf32>
    %10 = arith.mulf %8, %9 : vector<8x32xf32>
    %11 = arith.truncf %10 : vector<8x32xf32> to vector<8x32xbf16>
    %c0_7 = arith.constant 0 : index
    %c0_8 = arith.constant 0 : index
    %c0_9 = arith.constant 0 : index
    %12 = vector.load %arg5[%c0_7, %c0_8, %c0_9] : memref<1x8x32xbf16, #tpu.memory_space<vmem>>, vector<1x8x32xbf16>
    %13 = vector.shape_cast %12 : vector<1x8x32xbf16> to vector<8x32xbf16>
    %14 = vector.shape_cast %11 : vector<8x32xbf16> to vector<1x8x32xbf16>
    tpu.vector_store %arg5[%c0_7, %c0_8, %c0_9], %14 {strides = array<i32>} : memref<1x8x32xbf16, #tpu.memory_space<vmem>>, vector<1x8x32xbf16>,
    %15 = vector.extract_strided_slice %7 {offsets = [0, 32], sizes = [8, 32], strides = [1, 1]} : vector<8x96xf32> to vector<8x32xf32>
    %16 = arith.truncf %15 : vector<8x32xf32> to vector<8x32xbf16>
    %c0_10 = arith.constant 0 : index
    %c0_11 = arith.constant 0 : index
    %c0_12 = arith.constant 0 : index
    %17 = vector.load %arg6[%c0_10, %c0_11, %c0_12] : memref<1x8x32xbf16, #tpu.memory_space<vmem>>, vector<1x8x32xbf16>
    %18 = vector.shape_cast %17 : vector<1x8x32xbf16> to vector<8x32xbf16>
    %19 = vector.shape_cast %16 : vector<8x32xbf16> to vector<1x8x32xbf16>
    tpu.vector_store %arg6[%c0_10, %c0_11, %c0_12], %19 {strides = array<i32>} : memref<1x8x32xbf16, #tpu.memory_space<vmem>>, vector<1x8x32xbf16>,
    %20 = vector.extract_strided_slice %7 {offsets = [0, 64], sizes = [8, 32], strides = [1, 1]} : vector<8x96xf32> to vector<8x32xf32>
    %21 = arith.truncf %20 : vector<8x32xf32> to vector<8x32xbf16>
    %c0_13 = arith.constant 0 : index
    %c0_14 = arith.constant 0 : index
    %c0_15 = arith.constant 0 : index
    %22 = vector.load %arg7[%c0_13, %c0_14, %c0_15] : memref<1x8x32xbf16, #tpu.memory_space<vmem>>, vector<1x8x32xbf16>
    %23 = vector.shape_cast %22 : vector<1x8x32xbf16> to vector<8x32xbf16>
    %24 = vector.shape_cast %21 : vector<8x32xbf16> to vector<1x8x32xbf16>
    tpu.vector_store %arg7[%c0_13, %c0_14, %c0_15], %24 {strides = array<i32>} : memref<1x8x32xbf16, #tpu.memory_space<vmem>>, vector<1x8x32xbf16>,
    return
  }
  func.func @transform_0(%arg0: i32, %arg1: i32) -> (i32, i32, i32) {
    %c0_i32 = arith.constant 0 : i32
    %c0_i32_0 = arith.constant 0 : i32
    return %arg0, %arg1, %c0_i32 : i32, i32, i32
  }
  func.func @transform_1(%arg0: i32, %arg1: i32) -> (i32, i32) {
    %c0_i32 = arith.constant 0 : i32
    %c0_i32_0 = arith.constant 0 : i32
    %c0_i32_1 = arith.constant 0 : i32
    return %c0_i32, %c0_i32_0 : i32, i32
  }
  func.func @transform_2(%arg0: i32, %arg1: i32) -> (i32, i32) {
    %c0_i32 = arith.constant 0 : i32
    %c0_i32_0 = arith.constant 0 : i32
    %c0_i32_1 = arith.constant 0 : i32
    return %c0_i32, %c0_i32_0 : i32, i32
  }
  func.func @transform_3(%arg0: i32, %arg1: i32) -> (i32, i32, i32) {
    %c0_i32 = arith.constant 0 : i32
    %c0_i32_0 = arith.constant 0 : i32
    return %arg0, %arg1, %c0_i32 : i32, i32, i32
  }
  func.func @transform_4(%arg0: i32, %arg1: i32) -> (i32, i32, i32) {
    %c0_i32 = arith.constant 0 : i32
    %c0_i32_0 = arith.constant 0 : i32
    return %arg0, %arg1, %c0_i32 : i32, i32, i32
  }
  func.func @transform_5(%arg0: i32, %arg1: i32) -> (i32, i32, i32) {
    %c0_i32 = arith.constant 0 : i32
    %c0_i32_0 = arith.constant 0 : i32
    return %arg0, %arg1, %c0_i32 : i32, i32, i32
  }
}

module attributes {stable_mosaic.version = 11 : i64} {
  func.func @_flash_attn_kernel(%arg0: i32, %arg1: i32, %arg2: i32, %arg3: memref<1x8x32xf32, #tpu.memory_space<vmem>>, %arg4: memref<1x8x32xbf16, #tpu.memory_space<vmem>>, %arg5: memref<1x8x32xbf16, #tpu.memory_space<vmem>>, %arg6: memref<1x8x32xbf16, #tpu.memory_space<vmem>>, %arg7: memref<32x32xbf16, #tpu.memory_space<vmem>>, %arg8: memref<1x32xf32, #tpu.memory_space<vmem>>, %arg9: memref<1x32xf32, #tpu.memory_space<vmem>>, %arg10: memref<1x32xf32, #tpu.memory_space<vmem>>, %arg11: memref<1x8x32xf32, #tpu.memory_space<vmem>>, %arg12: memref<4x8x8xbf16, #tpu.memory_space<vmem>>, %arg13: memref<4x8x1xf32, #tpu.memory_space<vmem>>, %arg14: memref<4x8x1xf32, #tpu.memory_space<vmem>>, %arg15: memref<4x8x8xf32, #tpu.memory_space<vmem>>) attributes {dimension_semantics = [#tpu.dimension_semantics<parallel>, #tpu.dimension_semantics<parallel>, #tpu.dimension_semantics<arbitrary>], iteration_bounds = array<i64: 2, 1, 1>, scalar_prefetch = 0 : i64, scratch_operands = 4 : i64, tpu.core_type = #tpu.core_type<tc>, window_params = [{transform_indices = @transform_0, window_bounds = array<i64: 1, 8, 32>}, {transform_indices = @transform_1, window_bounds = array<i64: 1, 8, 32>}, {transform_indices = @transform_2, window_bounds = array<i64: 1, 8, 32>}, {transform_indices = @transform_3, window_bounds = array<i64: 1, 8, 32>}, {pipeline_mode = #tpu.pipeline_mode<synchronous>, transform_indices = @transform_4, window_bounds = array<i64: 32, 32>}, {pipeline_mode = #tpu.pipeline_mode<synchronous>, transform_indices = @transform_5, window_bounds = array<i64: 1, 32>}, {pipeline_mode = #tpu.pipeline_mode<synchronous>, transform_indices = @transform_6, window_bounds = array<i64: 1, 32>}, {pipeline_mode = #tpu.pipeline_mode<synchronous>, transform_indices = @transform_7, window_bounds = array<i64: 1, 32>}, {transform_indices = @transform_8, window_bounds = array<i64: 1, 8, 32>}]} {
    %c0_i32 = arith.constant 0 : i32
    %0 = arith.cmpi eq, %arg2, %c0_i32 : i32
    %1 = arith.extui %0 : i1 to i32
    %c0_i32_0 = arith.constant 0 : i32
    %2 = arith.cmpi ne, %1, %c0_i32_0 : i32
    scf.if %2 {
      %c0_32 = arith.constant 0 : index
      %c0_33 = arith.constant 0 : index
      %c0_34 = arith.constant 0 : index
      %53 = vector.load %arg4[%c0_32, %c0_33, %c0_34] : memref<1x8x32xbf16, #tpu.memory_space<vmem>>, vector<1x8x32xbf16>
      %54 = vector.shape_cast %53 : vector<1x8x32xbf16> to vector<8x32xbf16>
      %55 = vector.extract_strided_slice %54 {offsets = [0, 0], sizes = [8, 8], strides = [1, 1]} : vector<8x32xbf16> to vector<8x8xbf16>
      %56 = vector.extract_strided_slice %54 {offsets = [0, 8], sizes = [8, 8], strides = [1, 1]} : vector<8x32xbf16> to vector<8x8xbf16>
      %57 = vector.extract_strided_slice %54 {offsets = [0, 16], sizes = [8, 8], strides = [1, 1]} : vector<8x32xbf16> to vector<8x8xbf16>
      %58 = vector.extract_strided_slice %54 {offsets = [0, 24], sizes = [8, 8], strides = [1, 1]} : vector<8x32xbf16> to vector<8x8xbf16>
      %59 = vector.shape_cast %55 : vector<8x8xbf16> to vector<1x8x8xbf16>
      %60 = vector.shape_cast %56 : vector<8x8xbf16> to vector<1x8x8xbf16>
      %61 = vector.shape_cast %57 : vector<8x8xbf16> to vector<1x8x8xbf16>
      %62 = vector.shape_cast %58 : vector<8x8xbf16> to vector<1x8x8xbf16>
      %63 = tpu.concatenate %59, %60, %61, %62 in 0 : vector<1x8x8xbf16>, vector<1x8x8xbf16>, vector<1x8x8xbf16>, vector<1x8x8xbf16> -> vector<4x8x8xbf16>
      %c0_35 = arith.constant 0 : index
      %c0_36 = arith.constant 0 : index
      %c0_37 = arith.constant 0 : index
      %64 = vector.load %arg12[%c0_35, %c0_36, %c0_37] : memref<4x8x8xbf16, #tpu.memory_space<vmem>>, vector<4x8x8xbf16>
      tpu.vector_store %arg12[%c0_35, %c0_36, %c0_37], %63 {strides = array<i32>} : memref<4x8x8xbf16, #tpu.memory_space<vmem>>, vector<4x8x8xbf16>,
      %cst_38 = arith.constant 0xFF800000 : f32
      %65 = vector.broadcast %cst_38 : f32 to vector<4x8x1xf32>
      %c0_39 = arith.constant 0 : index
      %c0_40 = arith.constant 0 : index
      %c0_41 = arith.constant 0 : index
      %66 = vector.load %arg13[%c0_39, %c0_40, %c0_41] : memref<4x8x1xf32, #tpu.memory_space<vmem>>, vector<4x8x1xf32>
      tpu.vector_store %arg13[%c0_39, %c0_40, %c0_41], %65 {strides = array<i32>} : memref<4x8x1xf32, #tpu.memory_space<vmem>>, vector<4x8x1xf32>,
      %cst_42 = arith.constant 0.000000e+00 : f32
      %67 = vector.broadcast %cst_42 : f32 to vector<4x8x1xf32>
      %c0_43 = arith.constant 0 : index
      %c0_44 = arith.constant 0 : index
      %c0_45 = arith.constant 0 : index
      %68 = vector.load %arg14[%c0_43, %c0_44, %c0_45] : memref<4x8x1xf32, #tpu.memory_space<vmem>>, vector<4x8x1xf32>
      tpu.vector_store %arg14[%c0_43, %c0_44, %c0_45], %67 {strides = array<i32>} : memref<4x8x1xf32, #tpu.memory_space<vmem>>, vector<4x8x1xf32>,
      %cst_46 = arith.constant 0.000000e+00 : f32
      %69 = vector.broadcast %cst_46 : f32 to vector<4x8x8xf32>
      %c0_47 = arith.constant 0 : index
      %c0_48 = arith.constant 0 : index
      %c0_49 = arith.constant 0 : index
      %70 = vector.load %arg15[%c0_47, %c0_48, %c0_49] : memref<4x8x8xf32, #tpu.memory_space<vmem>>, vector<4x8x8xf32>
      tpu.vector_store %arg15[%c0_47, %c0_48, %c0_49], %69 {strides = array<i32>} : memref<4x8x8xf32, #tpu.memory_space<vmem>>, vector<4x8x8xf32>,
    } else {
    }
    %c0 = arith.constant 0 : index
    %c0_1 = arith.constant 0 : index
    %c0_2 = arith.constant 0 : index
    %3 = vector.load %arg5[%c0, %c0_1, %c0_2] : memref<1x8x32xbf16, #tpu.memory_space<vmem>>, vector<1x8x32xbf16>
    %4 = vector.shape_cast %3 : vector<1x8x32xbf16> to vector<8x32xbf16>
    %5 = vector.extract_strided_slice %4 {offsets = [0, 0], sizes = [8, 8], strides = [1, 1]} : vector<8x32xbf16> to vector<8x8xbf16>
    %6 = vector.extract_strided_slice %4 {offsets = [0, 8], sizes = [8, 8], strides = [1, 1]} : vector<8x32xbf16> to vector<8x8xbf16>
    %7 = vector.extract_strided_slice %4 {offsets = [0, 16], sizes = [8, 8], strides = [1, 1]} : vector<8x32xbf16> to vector<8x8xbf16>
    %8 = vector.extract_strided_slice %4 {offsets = [0, 24], sizes = [8, 8], strides = [1, 1]} : vector<8x32xbf16> to vector<8x8xbf16>
    %9 = vector.shape_cast %5 : vector<8x8xbf16> to vector<1x8x8xbf16>
    %10 = vector.shape_cast %6 : vector<8x8xbf16> to vector<1x8x8xbf16>
    %11 = vector.shape_cast %7 : vector<8x8xbf16> to vector<1x8x8xbf16>
    %12 = vector.shape_cast %8 : vector<8x8xbf16> to vector<1x8x8xbf16>
    %13 = tpu.concatenate %9, %10, %11, %12 in 0 : vector<1x8x8xbf16>, vector<1x8x8xbf16>, vector<1x8x8xbf16>, vector<1x8x8xbf16> -> vector<4x8x8xbf16>
    %c0_3 = arith.constant 0 : index
    %c0_4 = arith.constant 0 : index
    %c0_5 = arith.constant 0 : index
    %14 = vector.load %arg6[%c0_3, %c0_4, %c0_5] : memref<1x8x32xbf16, #tpu.memory_space<vmem>>, vector<1x8x32xbf16>
    %15 = vector.shape_cast %14 : vector<1x8x32xbf16> to vector<8x32xbf16>
    %16 = vector.extract_strided_slice %15 {offsets = [0, 0], sizes = [8, 8], strides = [1, 1]} : vector<8x32xbf16> to vector<8x8xbf16>
    %17 = vector.extract_strided_slice %15 {offsets = [0, 8], sizes = [8, 8], strides = [1, 1]} : vector<8x32xbf16> to vector<8x8xbf16>
    %18 = vector.extract_strided_slice %15 {offsets = [0, 16], sizes = [8, 8], strides = [1, 1]} : vector<8x32xbf16> to vector<8x8xbf16>
    %19 = vector.extract_strided_slice %15 {offsets = [0, 24], sizes = [8, 8], strides = [1, 1]} : vector<8x32xbf16> to vector<8x8xbf16>
    %20 = vector.shape_cast %16 : vector<8x8xbf16> to vector<1x8x8xbf16>
    %21 = vector.shape_cast %17 : vector<8x8xbf16> to vector<1x8x8xbf16>
    %22 = vector.shape_cast %18 : vector<8x8xbf16> to vector<1x8x8xbf16>
    %23 = vector.shape_cast %19 : vector<8x8xbf16> to vector<1x8x8xbf16>
    %24 = tpu.concatenate %20, %21, %22, %23 in 0 : vector<1x8x8xbf16>, vector<1x8x8xbf16>, vector<1x8x8xbf16>, vector<1x8x8xbf16> -> vector<4x8x8xbf16>
    %c0_6 = arith.constant 0 : index
    %c0_7 = arith.constant 0 : index
    %c0_8 = arith.constant 0 : index
    %25 = vector.load %arg12[%c0_6, %c0_7, %c0_8] : memref<4x8x8xbf16, #tpu.memory_space<vmem>>, vector<4x8x8xbf16>
    "tpu.trace_start"() <{level = 10 : i32, message = "hqd,hkd->hqk"}> : () -> ()
    %cst = arith.constant dense<0.000000e+00> : vector<4x8x8xf32>
    %26 = tpu.matmul %25, %13, %cst {dimension_numbers = #tpu.dot_dimension_numbers<[2], [2], [1], [1], [0, 0, 0, 1, 1, 1], [0], [0]>} : vector<4x8x8xbf16>, vector<4x8x8xbf16>, vector<4x8x8xf32> -> vector<4x8x8xf32>
    "tpu.trace_stop"() : () -> ()
    %c0_9 = arith.constant 0 : index
    %c0_10 = arith.constant 0 : index
    %c0_11 = arith.constant 0 : index
    %27 = vector.load %arg13[%c0_9, %c0_10, %c0_11] : memref<4x8x1xf32, #tpu.memory_space<vmem>>, vector<4x8x1xf32>
    %cst_12 = arith.constant dense<0xFF800000> : vector<4x8xf32>
    %28 = vector.multi_reduction <maximumf>, %26, %cst_12 [2] : vector<4x8x8xf32> to vector<4x8xf32>
    %29 = vector.shape_cast %28 : vector<4x8xf32> to vector<4x8x1xf32>
    %30 = arith.maximumf %27, %29 : vector<4x8x1xf32>
    %31 = arith.subf %27, %30 : vector<4x8x1xf32>
    %32 = math.exp %31 : vector<4x8x1xf32>
    %33 = vector.broadcast %30 : vector<4x8x1xf32> to vector<4x8x8xf32>
    %34 = arith.subf %26, %33 : vector<4x8x8xf32>
    %35 = math.exp %34 : vector<4x8x8xf32>
    %c0_13 = arith.constant 0 : index
    %c0_14 = arith.constant 0 : index
    %c0_15 = arith.constant 0 : index
    %36 = vector.load %arg14[%c0_13, %c0_14, %c0_15] : memref<4x8x1xf32, #tpu.memory_space<vmem>>, vector<4x8x1xf32>
    %37 = arith.mulf %32, %36 : vector<4x8x1xf32>
    %cst_16 = arith.constant dense<0.000000e+00> : vector<4x8xf32>
    %38 = vector.multi_reduction <add>, %35, %cst_16 [2] : vector<4x8x8xf32> to vector<4x8xf32>
    %39 = vector.shape_cast %38 : vector<4x8xf32> to vector<4x8x1xf32>
    %40 = arith.addf %37, %39 : vector<4x8x1xf32>
    %c0_17 = arith.constant 0 : index
    %c0_18 = arith.constant 0 : index
    %c0_19 = arith.constant 0 : index
    %41 = vector.load %arg14[%c0_17, %c0_18, %c0_19] : memref<4x8x1xf32, #tpu.memory_space<vmem>>, vector<4x8x1xf32>
    tpu.vector_store %arg14[%c0_17, %c0_18, %c0_19], %40 {strides = array<i32>} : memref<4x8x1xf32, #tpu.memory_space<vmem>>, vector<4x8x1xf32>,
    %c0_20 = arith.constant 0 : index
    %c0_21 = arith.constant 0 : index
    %c0_22 = arith.constant 0 : index
    %42 = vector.load %arg15[%c0_20, %c0_21, %c0_22] : memref<4x8x8xf32, #tpu.memory_space<vmem>>, vector<4x8x8xf32>
    %43 = vector.broadcast %32 : vector<4x8x1xf32> to vector<4x8x8xf32>
    %44 = arith.mulf %43, %42 : vector<4x8x8xf32>
    %45 = arith.truncf %35 : vector<4x8x8xf32> to vector<4x8x8xbf16>
    "tpu.trace_start"() <{level = 10 : i32, message = "hqk,hkd->hqd"}> : () -> ()
    %cst_23 = arith.constant dense<0.000000e+00> : vector<4x8x8xf32>
    %46 = tpu.matmul %45, %24, %cst_23 {dimension_numbers = #tpu.dot_dimension_numbers<[2], [1], [1], [2], [0, 0, 0, 1, 1, 2], [0], [0]>} : vector<4x8x8xbf16>, vector<4x8x8xbf16>, vector<4x8x8xf32> -> vector<4x8x8xf32>
    "tpu.trace_stop"() : () -> ()
    %47 = arith.addf %44, %46 : vector<4x8x8xf32>
    %c0_24 = arith.constant 0 : index
    %c0_25 = arith.constant 0 : index
    %c0_26 = arith.constant 0 : index
    %48 = vector.load %arg15[%c0_24, %c0_25, %c0_26] : memref<4x8x8xf32, #tpu.memory_space<vmem>>, vector<4x8x8xf32>
    tpu.vector_store %arg15[%c0_24, %c0_25, %c0_26], %47 {strides = array<i32>} : memref<4x8x8xf32, #tpu.memory_space<vmem>>, vector<4x8x8xf32>,
    %c0_27 = arith.constant 0 : index
    %c0_28 = arith.constant 0 : index
    %c0_29 = arith.constant 0 : index
    %49 = vector.load %arg13[%c0_27, %c0_28, %c0_29] : memref<4x8x1xf32, #tpu.memory_space<vmem>>, vector<4x8x1xf32>
    tpu.vector_store %arg13[%c0_27, %c0_28, %c0_29], %30 {strides = array<i32>} : memref<4x8x1xf32, #tpu.memory_space<vmem>>, vector<4x8x1xf32>,
    %c0_i32_30 = arith.constant 0 : i32
    %50 = arith.cmpi eq, %arg2, %c0_i32_30 : i32
    %51 = arith.extui %50 : i1 to i32
    %c0_i32_31 = arith.constant 0 : i32
    %52 = arith.cmpi ne, %51, %c0_i32_31 : i32
    scf.if %52 {
      %c0_32 = arith.constant 0 : index
      %c0_33 = arith.constant 0 : index
      %c0_34 = arith.constant 0 : index
      %53 = vector.load %arg15[%c0_32, %c0_33, %c0_34] : memref<4x8x8xf32, #tpu.memory_space<vmem>>, vector<4x8x8xf32>
      %c0_35 = arith.constant 0 : index
      %c0_36 = arith.constant 0 : index
      %c0_37 = arith.constant 0 : index
      %54 = vector.load %arg14[%c0_35, %c0_36, %c0_37] : memref<4x8x1xf32, #tpu.memory_space<vmem>>, vector<4x8x1xf32>
      %55 = tpu.reciprocal %54 {approx = true} : vector<4x8x1xf32> -> vector<4x8x1xf32>
      %56 = vector.broadcast %55 : vector<4x8x1xf32> to vector<4x8x8xf32>
      %57 = arith.mulf %53, %56 : vector<4x8x8xf32>
      %58 = vector.extract_strided_slice %57 {offsets = [0, 0, 0], sizes = [1, 8, 8], strides = [1, 1, 1]} : vector<4x8x8xf32> to vector<1x8x8xf32>
      %59 = vector.shape_cast %58 : vector<1x8x8xf32> to vector<8x8xf32>
      %60 = vector.extract_strided_slice %57 {offsets = [1, 0, 0], sizes = [1, 8, 8], strides = [1, 1, 1]} : vector<4x8x8xf32> to vector<1x8x8xf32>
      %61 = vector.shape_cast %60 : vector<1x8x8xf32> to vector<8x8xf32>
      %62 = vector.extract_strided_slice %57 {offsets = [2, 0, 0], sizes = [1, 8, 8], strides = [1, 1, 1]} : vector<4x8x8xf32> to vector<1x8x8xf32>
      %63 = vector.shape_cast %62 : vector<1x8x8xf32> to vector<8x8xf32>
      %64 = vector.extract_strided_slice %57 {offsets = [3, 0, 0], sizes = [1, 8, 8], strides = [1, 1, 1]} : vector<4x8x8xf32> to vector<1x8x8xf32>
      %65 = vector.shape_cast %64 : vector<1x8x8xf32> to vector<8x8xf32>
      %66 = tpu.concatenate %59, %61, %63, %65 in 1 : vector<8x8xf32>, vector<8x8xf32>, vector<8x8xf32>, vector<8x8xf32> -> vector<8x32xf32>
      %67 = arith.truncf %66 : vector<8x32xf32> to vector<8x32xbf16>
      %c0_38 = arith.constant 0 : index
      %c0_39 = arith.constant 0 : index
      %68 = vector.load %arg7[%c0_38, %c0_39] : memref<32x32xbf16, #tpu.memory_space<vmem>>, vector<32x32xbf16>
      %cst_40 = arith.constant dense<0.000000e+00> : vector<8x32xf32>
      %69 = tpu.matmul %67, %68, %cst_40 {dimension_numbers = #tpu.dot_dimension_numbers<[1], [0], [0], [1], [0, 0, 1, 1], [], []>} : vector<8x32xbf16>, vector<32x32xbf16>, vector<8x32xf32> -> vector<8x32xf32>
      %c0_41 = arith.constant 0 : index
      %c0_42 = arith.constant 0 : index
      %70 = vector.load %arg8[%c0_41, %c0_42] : memref<1x32xf32, #tpu.memory_space<vmem>>, vector<1x32xf32>
      %71 = vector.broadcast %70 : vector<1x32xf32> to vector<8x32xf32>
      %72 = arith.addf %69, %71 : vector<8x32xf32>
      %c0_43 = arith.constant 0 : index
      %c0_44 = arith.constant 0 : index
      %c0_45 = arith.constant 0 : index
      %73 = vector.load %arg3[%c0_43, %c0_44, %c0_45] : memref<1x8x32xf32, #tpu.memory_space<vmem>>, vector<1x8x32xf32>
      %74 = vector.shape_cast %73 : vector<1x8x32xf32> to vector<8x32xf32>
      %75 = arith.addf %72, %74 : vector<8x32xf32>
      %cst_46 = arith.constant dense<0.000000e+00> : vector<8xf32>
      %76 = vector.multi_reduction <add>, %75, %cst_46 [1] : vector<8x32xf32> to vector<8xf32>
      %77 = vector.shape_cast %76 : vector<8xf32> to vector<8x1xf32>
      %cst_47 = arith.constant 3.200000e+01 : f32
      %78 = vector.broadcast %cst_47 : f32 to vector<8x1xf32>
      %79 = arith.divf %77, %78 : vector<8x1xf32>
      %80 = arith.mulf %75, %75 : vector<8x32xf32>
      %cst_48 = arith.constant dense<0.000000e+00> : vector<8xf32>
      %81 = vector.multi_reduction <add>, %80, %cst_48 [1] : vector<8x32xf32> to vector<8xf32>
      %82 = vector.shape_cast %81 : vector<8xf32> to vector<8x1xf32>
      %cst_49 = arith.constant 3.200000e+01 : f32
      %83 = vector.broadcast %cst_49 : f32 to vector<8x1xf32>
      %84 = arith.divf %82, %83 : vector<8x1xf32>
      %85 = arith.mulf %79, %79 : vector<8x1xf32>
      %86 = arith.subf %84, %85 : vector<8x1xf32>
      %87 = vector.broadcast %79 : vector<8x1xf32> to vector<8x32xf32>
      %88 = arith.subf %75, %87 : vector<8x32xf32>
      %cst_50 = arith.constant 9.99999974E-6 : f32
      %89 = vector.broadcast %cst_50 : f32 to vector<8x1xf32>
      %90 = arith.addf %86, %89 : vector<8x1xf32>
      %91 = math.rsqrt %90 : vector<8x1xf32>
      %92 = vector.broadcast %91 : vector<8x1xf32> to vector<8x32xf32>
      %93 = arith.mulf %88, %92 : vector<8x32xf32>
      %c0_51 = arith.constant 0 : index
      %c0_52 = arith.constant 0 : index
      %94 = vector.load %arg9[%c0_51, %c0_52] : memref<1x32xf32, #tpu.memory_space<vmem>>, vector<1x32xf32>
      %95 = vector.broadcast %94 : vector<1x32xf32> to vector<8x32xf32>
      %96 = arith.mulf %93, %95 : vector<8x32xf32>
      %c0_53 = arith.constant 0 : index
      %c0_54 = arith.constant 0 : index
      %97 = vector.load %arg10[%c0_53, %c0_54] : memref<1x32xf32, #tpu.memory_space<vmem>>, vector<1x32xf32>
      %98 = vector.broadcast %97 : vector<1x32xf32> to vector<8x32xf32>
      %99 = arith.addf %96, %98 : vector<8x32xf32>
      %c0_55 = arith.constant 0 : index
      %c0_56 = arith.constant 0 : index
      %c0_57 = arith.constant 0 : index
      %100 = vector.load %arg11[%c0_55, %c0_56, %c0_57] : memref<1x8x32xf32, #tpu.memory_space<vmem>>, vector<1x8x32xf32>
      %101 = vector.shape_cast %100 : vector<1x8x32xf32> to vector<8x32xf32>
      %102 = vector.shape_cast %99 : vector<8x32xf32> to vector<1x8x32xf32>
      tpu.vector_store %arg11[%c0_55, %c0_56, %c0_57], %102 {strides = array<i32>} : memref<1x8x32xf32, #tpu.memory_space<vmem>>, vector<1x8x32xf32>,
    } else {
    }
    return
  }
  func.func @transform_0(%arg0: i32, %arg1: i32, %arg2: i32) -> (i32, i32, i32) {
    %c0_i32 = arith.constant 0 : i32
    %c0_i32_0 = arith.constant 0 : i32
    return %arg0, %arg1, %c0_i32 : i32, i32, i32
  }
  func.func @transform_1(%arg0: i32, %arg1: i32, %arg2: i32) -> (i32, i32, i32) {
    %c0_i32 = arith.constant 0 : i32
    %c0_i32_0 = arith.constant 0 : i32
    return %arg0, %arg1, %c0_i32 : i32, i32, i32
  }
  func.func @transform_2(%arg0: i32, %arg1: i32, %arg2: i32) -> (i32, i32, i32) {
    %c0_i32 = arith.constant 0 : i32
    %c0_i32_0 = arith.constant 0 : i32
    return %arg0, %arg2, %c0_i32 : i32, i32, i32
  }
  func.func @transform_3(%arg0: i32, %arg1: i32, %arg2: i32) -> (i32, i32, i32) {
    %c0_i32 = arith.constant 0 : i32
    %c0_i32_0 = arith.constant 0 : i32
    return %arg0, %arg2, %c0_i32 : i32, i32, i32
  }
  func.func @transform_4(%arg0: i32, %arg1: i32, %arg2: i32) -> (i32, i32) {
    %c0_i32 = arith.constant 0 : i32
    %c0_i32_0 = arith.constant 0 : i32
    %c0_i32_1 = arith.constant 0 : i32
    return %c0_i32, %c0_i32_0 : i32, i32
  }
  func.func @transform_5(%arg0: i32, %arg1: i32, %arg2: i32) -> (i32, i32) {
    %c0_i32 = arith.constant 0 : i32
    %c0_i32_0 = arith.constant 0 : i32
    %c0_i32_1 = arith.constant 0 : i32
    return %c0_i32, %c0_i32_0 : i32, i32
  }
  func.func @transform_6(%arg0: i32, %arg1: i32, %arg2: i32) -> (i32, i32) {
    %c0_i32 = arith.constant 0 : i32
    %c0_i32_0 = arith.constant 0 : i32
    %c0_i32_1 = arith.constant 0 : i32
    return %c0_i32, %c0_i32_0 : i32, i32
  }
  func.func @transform_7(%arg0: i32, %arg1: i32, %arg2: i32) -> (i32, i32) {
    %c0_i32 = arith.constant 0 : i32
    %c0_i32_0 = arith.constant 0 : i32
    %c0_i32_1 = arith.constant 0 : i32
    return %c0_i32, %c0_i32_0 : i32, i32
  }
  func.func @transform_8(%arg0: i32, %arg1: i32, %arg2: i32) -> (i32, i32, i32) {
    %c0_i32 = arith.constant 0 : i32
    %c0_i32_0 = arith.constant 0 : i32
    return %arg0, %arg1, %c0_i32 : i32, i32, i32
  }
}

</mosaic_0001>

<llo_original>
// kernel: multi_head_attention_forward.3
$region0: #{multi_head_attention_forward.3}
  #allocation0 [shape = 'u32[]', space=smem, size = 0x4, offset = 0x4, fixed_abs, tag = 'smem constant byte address 0x4 - core index']
  #allocation1 [shape = 'u32[72,128]{1,0:T(1,128)}', space=vmem, size = 0x9000, scoped, tag = 'internal scratch']
  #allocation2 [shape = 'bf16[4,8,8]{2,1,0:T(8,128)(2,1)}', space=vmem, size = 0x2000, scoped, tag = 'scratch operand']
  #allocation3 [shape = 'f32[4,8,1]{2,1,0:T(8,128)}', space=vmem, size = 0x4000, scoped, tag = 'scratch operand']
  #allocation4 [shape = 'f32[4,8,1]{2,1,0:T(8,128)}', space=vmem, size = 0x4000, scoped, tag = 'scratch operand']
  #allocation5 [shape = 'f32[4,8,8]{2,1,0:T(8,128)}', space=vmem, size = 0x4000, scoped, tag = 'scratch operand']
  %s0 = inlined_call_operand.hbm [shape: f32[2,8,32], index: 0, kind: input, shape index: {}]
  %s1 = inlined_call_operand.vmem [shape: bf16[2,8,32], index: 1, kind: input, shape index: {}]
  %s2 = inlined_call_operand.vmem [shape: bf16[2,8,32], index: 2, kind: input, shape index: {}]
  %s3 = inlined_call_operand.vmem [shape: bf16[2,8,32], index: 3, kind: input, shape index: {}]
  %s4 = inlined_call_operand.hbm [shape: bf16[32,32], index: 4, kind: input, shape index: {}]
  %s5 = inlined_call_operand.vmem [shape: f32[1,32], index: 5, kind: input, shape index: {}]
  %s6 = inlined_call_operand.vmem [shape: f32[1,32], index: 6, kind: input, shape index: {}]
  %s7 = inlined_call_operand.vmem [shape: f32[1,32], index: 7, kind: input, shape index: {}]
  %s8 = inlined_call_operand.hbm [shape: f32[2,8,32], index: 8, kind: output, shape index: {}]
  %s9 = sld [smem:[#allocation0]]
  $region81: #{multi_head_attention_forward.3} parent=0
    _
  %s11 = ssub.s32 1, %s9
  %s12 = scalar_select 0, %s11, %s9
  $region1: #{multi_head_attention_forward.3} parent=0
    #allocation6 [shape = 'u8[8192]{0}', space=vmem, size = 0x2000, scoped, tag = 'input window, operand 0']
    #allocation7 [shape = 's32[2]{0}', space=sflag, size = 0x8, scoped, tag = 'scoped memory for multi_head_attention_forward.3']
    #allocation8 [shape = 's32[2]{0}', space=sflag, size = 0x8, scoped, tag = 'scoped memory for multi_head_attention_forward.3']
    #allocation9 [shape = 'u8[8192]{0}', space=vmem, size = 0x2000, scoped, tag = 'input window, operand 4, single buffered']
    #allocation10 [shape = 's32[1]{0}', space=sflag, size = 0x4, scoped, tag = 'scoped memory for multi_head_attention_forward.3']
    #allocation11 [shape = 'u8[8192]{0}', space=vmem, size = 0x2000, scoped, tag = 'output window, operand 0']
    %13 = vsyncpa [#allocation7], 0
    %s14 = scalar_lea.sflag [#allocation7], 1
    %15 = vsyncpa %s14, 0
    %16 = vsyncpa [#allocation10], 0
    %17 = vsyncpa [#allocation8], 0
    %s18 = scalar_lea.sflag [#allocation8], 1
    %19 = vsyncpa %s18, 0
    loop: start=0, step=1, limit=4
    $region2: #{multi_head_attention_forward.3} parent=1 // loop_pre_header
      _
    $region3: #{multi_head_attention_forward.3} parent=1 // loop_header
      %s21 = sphi 0, %s25
      %p22 = scmp.ge.s32.totalorder %s21, 4
      %s28 = sphi 0, %s47
      %s29 = sphi 0, %s43
      %s30 = sphi 0, %s39
      %s31 = sphi 0, %s28
      %s32 = sphi 0, %s29
      %s33 = sphi 0, %s30
      %s34 = sphi 0, %s31
      %s35 = sphi 0, %s32
      %s36 = sphi 0, %s33
      %s52 = sphi 0, %s54
      %s55 = sphi 0, %s52
      %s56 = sphi 0, %s55
      %s72 = sphi 0, %s56
      %s80 = sphi 0, %s82
      %s83 = sphi 0, %s80
      %s84 = sphi 0, %s83
      %s100 = sphi 0, %s84
      %s108 = sphi 0, %s110
      %s111 = sphi 0, %s108
      %s112 = sphi 0, %s111
      %s128 = sphi 0, %s112
      %s136 = sphi 0, %s138
      %s139 = sphi 0, %s136
      %s140 = sphi 0, %s139
      %s156 = sphi 0, %s140
      %s160 = sphi 0, %s160
      %s162 = sphi 0, %s160
      %s163 = sphi 0, %s162
      %s177 = sphi 0, %s163
      %s181 = sphi 0, %s181
      %s183 = sphi 0, %s181
      %s184 = sphi 0, %s183
      %s198 = sphi 0, %s184
      %s202 = sphi 0, %s202
      %s204 = sphi 0, %s202
      %s205 = sphi 0, %s204
      %s219 = sphi 0, %s205
      %s223 = sphi 0, %s223
      %s225 = sphi 0, %s223
      %s226 = sphi 0, %s225
      %s240 = sphi 0, %s226
      %s248 = sphi 0, %s250
      %s251 = sphi 0, %s248
      %s252 = sphi 0, %s251
      %s268 = sphi 0, %s252
    $region4: #{multi_head_attention_forward.3} parent=1 // loop_header_branch
      %24 = sbr.rel (%p22) target = $region8
    $region5: #{multi_head_attention_forward.3} parent=1 // loop_body
      %s26 = ssub.s32 %s21, 1
      %s27 = ssub.s32 %s21, 2
      %s37 = sadd.s32 1, %s30
      %p38 = scmp.ge.s32.totalorder %s37, 1
      %s39 = scalar_select %p38, 0, %s37
      %s40 = sadd.s32 1, %s29
      %s41 = scalar_select %p38, %s40, %s29
      %p42 = scmp.ge.s32.totalorder %s41, 1
      %s43 = scalar_select %p42, 0, %s41
      %s44 = sadd.s32 1, %s28
      %s45 = scalar_select %p42, %s44, %s28
      %p46 = scmp.ge.s32.totalorder %s45, 2
      %s47 = scalar_select %p46, 0, %s45
      %s48 = ssub.s32 %s28, %s47
      %s49 = ssub.s32 %s29, %s43
      %s50 = sor.u32 %s48, %s49
      %p51 = scmp.eq.s32.totalorder %s50, 0
      %s53 = sadd.s32 %s52, 1
      %s54 = scalar_select %p51, %s52, %s53
      %p57 = pneg %p51
      %p58 = scmp.eq.s32.totalorder %s21, 1
      %p59 = por %p57, %p58
      %p60 = scmp.ne.s32.totalorder %s52, %s55
      %p61 = scmp.eq.s32.totalorder %s21, 0
      %p62 = por %p60, %p61
      %p63 = scmp.ne.s32.totalorder %s52, %s55
      %p64 = scmp.eq.s32.totalorder %s26, 1
      %p65 = por %p63, %p64
      %p66 = scmp.ne.s32.totalorder %s55, %s56
      %p67 = scmp.eq.s32.totalorder %s26, 0
      %p68 = por %p66, %p67
      %p69 = scmp.ne.s32.totalorder %s55, %s56
      %p70 = scmp.eq.s32.totalorder %s27, 1
      %p71 = por %p69, %p70
      %p73 = scmp.ne.s32.totalorder %s56, %s72
      %p74 = scmp.eq.s32.totalorder %s27, 0
      %p75 = por %p73, %p74
      %s76 = ssub.s32 %s28, %s47
      %s77 = ssub.s32 %s29, %s43
      %s78 = sor.u32 %s76, %s77
      %p79 = scmp.eq.s32.totalorder %s78, 0
      %s81 = sadd.s32 %s80, 1
      %s82 = scalar_select %p79, %s80, %s81
      %p85 = pneg %p79
      %p86 = scmp.eq.s32.totalorder %s21, 1
      %p87 = por %p85, %p86
      %p88 = scmp.ne.s32.totalorder %s80, %s83
      %p89 = scmp.eq.s32.totalorder %s21, 0
      %p90 = por %p88, %p89
      %p91 = scmp.ne.s32.totalorder %s80, %s83
      %p92 = scmp.eq.s32.totalorder %s26, 1
      %p93 = por %p91, %p92
      %p94 = scmp.ne.s32.totalorder %s83, %s84
      %p95 = scmp.eq.s32.totalorder %s26, 0
      %p96 = por %p94, %p95
      %p97 = scmp.ne.s32.totalorder %s83, %s84
      %p98 = scmp.eq.s32.totalorder %s27, 1
      %p99 = por %p97, %p98
      %p101 = scmp.ne.s32.totalorder %s84, %s100
      %p102 = scmp.eq.s32.totalorder %s27, 0
      %p103 = por %p101, %p102
      %s104 = ssub.s32 %s28, %s47
      %s105 = ssub.s32 %s30, %s39
      %s106 = sor.u32 %s104, %s105
      %p107 = scmp.eq.s32.totalorder %s106, 0
      %s109 = sadd.s32 %s108, 1
      %s110 = scalar_select %p107, %s108, %s109
      %p113 = pneg %p107
      %p114 = scmp.eq.s32.totalorder %s21, 1
      %p115 = por %p113, %p114
      %p116 = scmp.ne.s32.totalorder %s108, %s111
      %p117 = scmp.eq.s32.totalorder %s21, 0
      %p118 = por %p116, %p117
      %p119 = scmp.ne.s32.totalorder %s108, %s111
      %p120 = scmp.eq.s32.totalorder %s26, 1
      %p121 = por %p119, %p120
      %p122 = scmp.ne.s32.totalorder %s111, %s112
      %p123 = scmp.eq.s32.totalorder %s26, 0
      %p124 = por %p122, %p123
      %p125 = scmp.ne.s32.totalorder %s111, %s112
      %p126 = scmp.eq.s32.totalorder %s27, 1
      %p127 = por %p125, %p126
      %p129 = scmp.ne.s32.totalorder %s112, %s128
      %p130 = scmp.eq.s32.totalorder %s27, 0
      %p131 = por %p129, %p130
      %s132 = ssub.s32 %s28, %s47
      %s133 = ssub.s32 %s30, %s39
      %s134 = sor.u32 %s132, %s133
      %p135 = scmp.eq.s32.totalorder %s134, 0
      %s137 = sadd.s32 %s136, 1
      %s138 = scalar_select %p135, %s136, %s137
      %p141 = pneg %p135
      %p142 = scmp.eq.s32.totalorder %s21, 1
      %p143 = por %p141, %p142
      %p144 = scmp.ne.s32.totalorder %s136, %s139
      %p145 = scmp.eq.s32.totalorder %s21, 0
      %p146 = por %p144, %p145
      %p147 = scmp.ne.s32.totalorder %s136, %s139
      %p148 = scmp.eq.s32.totalorder %s26, 1
      %p149 = por %p147, %p148
      %p150 = scmp.ne.s32.totalorder %s139, %s140
      %p151 = scmp.eq.s32.totalorder %s26, 0
      %p152 = por %p150, %p151
      %p153 = scmp.ne.s32.totalorder %s139, %s140
      %p154 = scmp.eq.s32.totalorder %s27, 1
      %p155 = por %p153, %p154
      %p157 = scmp.ne.s32.totalorder %s140, %s156
      %p158 = scmp.eq.s32.totalorder %s27, 0
      %p159 = por %p157, %p158
      %s161 = sadd.s32 %s160, 1
      %p164 = scmp.eq.s32.totalorder %s21, 1
      %p165 = scmp.ne.s32.totalorder %s160, %s162
      %p166 = scmp.eq.s32.totalorder %s21, 0
      %p167 = por %p165, %p166
      %p168 = scmp.ne.s32.totalorder %s160, %s162
      %p169 = scmp.eq.s32.totalorder %s26, 1
      %p170 = por %p168, %p169
      %p171 = scmp.ne.s32.totalorder %s162, %s163
      %p172 = scmp.eq.s32.totalorder %s26, 0
      %p173 = por %p171, %p172
      %p174 = scmp.ne.s32.totalorder %s162, %s163
      %p175 = scmp.eq.s32.totalorder %s27, 1
      %p176 = por %p174, %p175
      %p178 = scmp.ne.s32.totalorder %s163, %s177
      %p179 = scmp.eq.s32.totalorder %s27, 0
      %p180 = por %p178, %p179
      %s182 = sadd.s32 %s181, 1
      %p185 = scmp.eq.s32.totalorder %s21, 1
      %p186 = scmp.ne.s32.totalorder %s181, %s183
      %p187 = scmp.eq.s32.totalorder %s21, 0
      %p188 = por %p186, %p187
      %p189 = scmp.ne.s32.totalorder %s181, %s183
      %p190 = scmp.eq.s32.totalorder %s26, 1
      %p191 = por %p189, %p190
      %p192 = scmp.ne.s32.totalorder %s183, %s184
      %p193 = scmp.eq.s32.totalorder %s26, 0
      %p194 = por %p192, %p193
      %p195 = scmp.ne.s32.totalorder %s183, %s184
      %p196 = scmp.eq.s32.totalorder %s27, 1
      %p197 = por %p195, %p196
      %p199 = scmp.ne.s32.totalorder %s184, %s198
      %p200 = scmp.eq.s32.totalorder %s27, 0
      %p201 = por %p199, %p200
      %s203 = sadd.s32 %s202, 1
      %p206 = scmp.eq.s32.totalorder %s21, 1
      %p207 = scmp.ne.s32.totalorder %s202, %s204
      %p208 = scmp.eq.s32.totalorder %s21, 0
      %p209 = por %p207, %p208
      %p210 = scmp.ne.s32.totalorder %s202, %s204
      %p211 = scmp.eq.s32.totalorder %s26, 1
      %p212 = por %p210, %p211
      %p213 = scmp.ne.s32.totalorder %s204, %s205
      %p214 = scmp.eq.s32.totalorder %s26, 0
      %p215 = por %p213, %p214
      %p216 = scmp.ne.s32.totalorder %s204, %s205
      %p217 = scmp.eq.s32.totalorder %s27, 1
      %p218 = por %p216, %p217
      %p220 = scmp.ne.s32.totalorder %s205, %s219
      %p221 = scmp.eq.s32.totalorder %s27, 0
      %p222 = por %p220, %p221
      %s224 = sadd.s32 %s223, 1
      %p227 = scmp.eq.s32.totalorder %s21, 1
      %p228 = scmp.ne.s32.totalorder %s223, %s225
      %p229 = scmp.eq.s32.totalorder %s21, 0
      %p230 = por %p228, %p229
      %p231 = scmp.ne.s32.totalorder %s223, %s225
      %p232 = scmp.eq.s32.totalorder %s26, 1
      %p233 = por %p231, %p232
      %p234 = scmp.ne.s32.totalorder %s225, %s226
      %p235 = scmp.eq.s32.totalorder %s26, 0
      %p236 = por %p234, %p235
      %p237 = scmp.ne.s32.totalorder %s225, %s226
      %p238 = scmp.eq.s32.totalorder %s27, 1
      %p239 = por %p237, %p238
      %p241 = scmp.ne.s32.totalorder %s226, %s240
      %p242 = scmp.eq.s32.totalorder %s27, 0
      %p243 = por %p241, %p242
      %s244 = ssub.s32 %s28, %s47
      %s245 = ssub.s32 %s29, %s43
      %s246 = sor.u32 %s244, %s245
      %p247 = scmp.eq.s32.totalorder %s246, 0
      %s249 = sadd.s32 %s248, 1
      %s250 = scalar_select %p247, %s248, %s249
      %p253 = pneg %p247
      %p254 = scmp.eq.s32.totalorder %s21, 1
      %p255 = por %p253, %p254
      %p256 = scmp.ne.s32.totalorder %s248, %s251
      %p257 = scmp.eq.s32.totalorder %s21, 0
      %p258 = por %p256, %p257
      %p259 = scmp.ne.s32.totalorder %s248, %s251
      %p260 = scmp.eq.s32.totalorder %s26, 1
      %p261 = por %p259, %p260
      %p262 = scmp.ne.s32.totalorder %s251, %s252
      %p263 = scmp.eq.s32.totalorder %s26, 0
      %p264 = por %p262, %p263
      %p265 = scmp.ne.s32.totalorder %s251, %s252
      %p266 = scmp.eq.s32.totalorder %s27, 1
      %p267 = por %p265, %p266
      %p269 = scmp.ne.s32.totalorder %s252, %s268
      %p270 = scmp.eq.s32.totalorder %s27, 0
      %p271 = por %p269, %p270
      %p272 = scmp.le.s32.totalorder 1, %s21
      %p273 = scmp.lt.s32.totalorder %s21, 3
      %p274 = pnand %p272, %p273
      %p275 = pneg %p274
      // Predicated region
      $region9: #{multi_head_attention_forward.3} parent=5 // pred_check
        _
      $region10: #{multi_head_attention_forward.3} parent=5 // pred_check_branch
        %277 = sbr.rel (%p274) target = $region12
      $region11: #{multi_head_attention_forward.3} parent=5 // pred_region
        %s278 = ssub.s32 %s21, 1
        // Predicated region
        $region13: #{multi_head_attention_forward.3} parent=11 // pred_check
          %p279 = pneg %p173
        $region14: #{multi_head_attention_forward.3} parent=11 // pred_check_branch
          %281 = sbr.rel (%p279) target = $region16
        $region15: #{multi_head_attention_forward.3} parent=11 // pred_region
          %283 = vsyncadd [#allocation10], 0
          %s284 = sshll.u32 %s4, 4
          %s285 = int_to_ptr.hbm [resolvable:$true] %s284
          %s286 = sshll.u32 [#allocation9], 4
          %s287 = int_to_ptr.vmem [resolvable:$true] %s286
          %292 = dma.hbm_to_vmem [thread:$0]  %s285, 256, %s287, [#allocation10], 64, 64, 4
        $region16: #{multi_head_attention_forward.3} parent=11 // pred_fallthru
          _
        // Predicated region
        $region17: #{multi_head_attention_forward.3} parent=11 // pred_check
          %p293 = pneg %p194
        $region18: #{multi_head_attention_forward.3} parent=11 // pred_check_branch
          %295 = sbr.rel (%p293) target = $region20
        $region19: #{multi_head_attention_forward.3} parent=11 // pred_region
          _
        $region20: #{multi_head_attention_forward.3} parent=11 // pred_fallthru
          _
        // Predicated region
        $region21: #{multi_head_attention_forward.3} parent=11 // pred_check
          %p296 = pneg %p215
        $region22: #{multi_head_attention_forward.3} parent=11 // pred_check_branch
          %298 = sbr.rel (%p296) target = $region24
        $region23: #{multi_head_attention_forward.3} parent=11 // pred_region
          _
        $region24: #{multi_head_attention_forward.3} parent=11 // pred_fallthru
          _
        // Predicated region
        $region25: #{multi_head_attention_forward.3} parent=11 // pred_check
          %p299 = pneg %p236
        $region26: #{multi_head_attention_forward.3} parent=11 // pred_check_branch
          %301 = sbr.rel (%p299) target = $region28
        $region27: #{multi_head_attention_forward.3} parent=11 // pred_region
          _
        $region28: #{multi_head_attention_forward.3} parent=11 // pred_fallthru
          _
      $region12: #{multi_head_attention_forward.3} parent=5 // pred_fallthru
        _
      %p302 = scmp.lt.s32.totalorder %s21, 2
      // Predicated region
      $region29: #{multi_head_attention_forward.3} parent=5 // pred_check
        %p303 = pneg %p302
      $region30: #{multi_head_attention_forward.3} parent=5 // pred_check_branch
        %305 = sbr.rel (%p303) target = $region32
      $region31: #{multi_head_attention_forward.3} parent=5 // pred_region
        // Predicated region
        $region33: #{multi_head_attention_forward.3} parent=31 // pred_check
          %p306 = pneg %p62
        $region34: #{multi_head_attention_forward.3} parent=31 // pred_check_branch
          %308 = sbr.rel (%p306) target = $region36
        $region35: #{multi_head_attention_forward.3} parent=31 // pred_region
          %s309 = sand.u32 %s52, 1
          %s310 = scalar_lea.sflag [#allocation7], %s309
          %s311 = sand.u32 %s52, 1
          %s312 = smul.addr %s311, 8
          %s313 = scalar_lea.vmem [#allocation6], %s312
          %315 = vsyncadd %s310, 0
          %s316 = sadd.s32 %s29, %s28
          %s317 = smul.addr %s316, 8
          %s318 = scalar_lea.hbm %s0, %s317
          %s320 = sshll.u32 %s318, 4
          %s321 = int_to_ptr.hbm [resolvable:$true] %s320
          %s322 = sshll.u32 %s313, 4
          %s323 = int_to_ptr.vmem [resolvable:$true] %s322
          %325 = dma.hbm_to_vmem [thread:$0]  %s321, 128, %s323, %s310
        $region36: #{multi_head_attention_forward.3} parent=31 // pred_fallthru
          _
        // Predicated region
        $region37: #{multi_head_attention_forward.3} parent=31 // pred_check
          %p326 = pneg %p90
        $region38: #{multi_head_attention_forward.3} parent=31 // pred_check_branch
          %328 = sbr.rel (%p326) target = $region40
        $region39: #{multi_head_attention_forward.3} parent=31 // pred_region
          %p329 = scmp.lt.s32.totalorder %s28, 1
          %s330 = scalar_select %p329, %s28, 1
          %p331 = scmp.lt.s32.totalorder %s29, 0
          %s332 = scalar_select %p331, %s29, 0
          %s333 = sadd.s32 %s332, %s330
          %s334 = smul.addr %s333, 4
          %s335 = scalar_lea.vmem %s1, %s334
        $region40: #{multi_head_attention_forward.3} parent=31 // pred_fallthru
          _
        // Predicated region
        $region41: #{multi_head_attention_forward.3} parent=31 // pred_check
          %p336 = pneg %p118
        $region42: #{multi_head_attention_forward.3} parent=31 // pred_check_branch
          %338 = sbr.rel (%p336) target = $region44
        $region43: #{multi_head_attention_forward.3} parent=31 // pred_region
          %p339 = scmp.lt.s32.totalorder %s28, 1
          %s340 = scalar_select %p339, %s28, 1
          %p341 = scmp.lt.s32.totalorder %s30, 0
          %s342 = scalar_select %p341, %s30, 0
          %s343 = sadd.s32 %s342, %s340
          %s344 = smul.addr %s343, 4
          %s345 = scalar_lea.vmem %s2, %s344
        $region44: #{multi_head_attention_forward.3} parent=31 // pred_fallthru
          _
        // Predicated region
        $region45: #{multi_head_attention_forward.3} parent=31 // pred_check
          %p346 = pneg %p146
        $region46: #{multi_head_attention_forward.3} parent=31 // pred_check_branch
          %348 = sbr.rel (%p346) target = $region48
        $region47: #{multi_head_attention_forward.3} parent=31 // pred_region
          %p349 = scmp.lt.s32.totalorder %s28, 1
          %s350 = scalar_select %p349, %s28, 1
          %p351 = scmp.lt.s32.totalorder %s30, 0
          %s352 = scalar_select %p351, %s30, 0
          %s353 = sadd.s32 %s352, %s350
          %s354 = smul.addr %s353, 4
          %s355 = scalar_lea.vmem %s3, %s354
        $region48: #{multi_head_attention_forward.3} parent=31 // pred_fallthru
          _
      $region32: #{multi_head_attention_forward.3} parent=5 // pred_fallthru
        _
      %p356 = scmp.le.s32.totalorder 1, %s21
      %p357 = scmp.lt.s32.totalorder %s21, 3
      %p358 = pnand %p356, %p357
      %p359 = pneg %p358
      // Predicated region
      $region49: #{multi_head_attention_forward.3} parent=5 // pred_check
        _
      $region50: #{multi_head_attention_forward.3} parent=5 // pred_check_branch
        %361 = sbr.rel (%p358) target = $region52
      $region51: #{multi_head_attention_forward.3} parent=5 // pred_region
        %s362 = ssub.s32 %s21, 1
        %s363 = sand.u32 %s55, 1
        %s364 = scalar_lea.sflag [#allocation7], %s363
        %s365 = sand.u32 %s55, 1
        %s366 = smul.addr %s365, 8
        %s367 = scalar_lea.vmem [#allocation6], %s366
        // Predicated region
        $region53: #{multi_head_attention_forward.3} parent=51 // pred_check
          %p368 = pneg %p68
        $region54: #{multi_head_attention_forward.3} parent=51 // pred_check_branch
          %370 = sbr.rel (%p368) target = $region56
        $region55: #{multi_head_attention_forward.3} parent=51 // pred_region
          %372 = dma.done %s364, 128
        $region56: #{multi_head_attention_forward.3} parent=51 // pred_fallthru
          _
        // Predicated region
        $region57: #{multi_head_attention_forward.3} parent=51 // pred_check
          %p373 = pneg %p173
        $region58: #{multi_head_attention_forward.3} parent=51 // pred_check_branch
          %375 = sbr.rel (%p373) target = $region60
        $region59: #{multi_head_attention_forward.3} parent=51 // pred_region
          %377 = dma.done [#allocation10], 256
        $region60: #{multi_head_attention_forward.3} parent=51 // pred_fallthru
          _
        %s378 = sand.u32 %s55, 1
        %s379 = scalar_lea.sflag [#allocation7], %s378
        %s380 = sand.u32 %s55, 1
        %s381 = smul.addr %s380, 8
        %s382 = scalar_lea.vmem [#allocation6], %s381
        %p383 = pneg %p68
        %p384 = pneg %p65
        %p385 = scmp.lt.s32.totalorder %s31, 1
        %s386 = scalar_select %p385, %s31, 1
        %p387 = scmp.lt.s32.totalorder %s32, 0
        %s388 = scalar_select %p387, %s32, 0
        %s389 = sadd.s32 %s388, %s386
        %s390 = smul.addr %s389, 4
        %s391 = scalar_lea.vmem %s1, %s390
        %p392 = pneg %p96
        %p393 = pneg %p93
        %p394 = scmp.lt.s32.totalorder %s31, 1
        %s395 = scalar_select %p394, %s31, 1
        %p396 = scmp.lt.s32.totalorder %s33, 0
        %s397 = scalar_select %p396, %s33, 0
        %s398 = sadd.s32 %s397, %s395
        %s399 = smul.addr %s398, 4
        %s400 = scalar_lea.vmem %s2, %s399
        %p401 = pneg %p124
        %p402 = pneg %p121
        %p403 = scmp.lt.s32.totalorder %s31, 1
        %s404 = scalar_select %p403, %s31, 1
        %p405 = scmp.lt.s32.totalorder %s33, 0
        %s406 = scalar_select %p405, %s33, 0
        %s407 = sadd.s32 %s406, %s404
        %s408 = smul.addr %s407, 4
        %s409 = scalar_lea.vmem %s3, %s408
        %p410 = pneg %p152
        %p411 = pneg %p149
        %p412 = pneg %p173
        %p413 = pneg %p170
        %p414 = pneg %p194
        %p415 = pneg %p191
        %p416 = pneg %p215
        %p417 = pneg %p212
        %p418 = pneg %p236
        %p419 = pneg %p233
        %p420 = pneg %p264
        %p421 = pneg %p261
        %s422 = sand.u32 %s251, 1
        %s423 = scalar_lea.sflag [#allocation8], %s422
        %s424 = sand.u32 %s251, 1
        %s425 = smul.addr %s424, 8
        %s426 = scalar_lea.vmem [#allocation11], %s425
        %p427 = scmp.lt.s32.totalorder %s31, 1
        %s428 = scalar_select %p427, %s31, 1
        %p429 = scmp.lt.s32.totalorder %s32, 0
        %s430 = scalar_select %p429, %s32, 0
        %s431 = sadd.s32 %s430, %s428
        %s432 = smul.addr %s431, 4
        %s433 = scalar_lea.vmem %s1, %s432
        %p434 = scmp.lt.s32.totalorder %s31, 1
        %s435 = scalar_select %p434, %s31, 1
        %p436 = scmp.lt.s32.totalorder %s33, 0
        %s437 = scalar_select %p436, %s33, 0
        %s438 = sadd.s32 %s437, %s435
        %s439 = smul.addr %s438, 4
        %s440 = scalar_lea.vmem %s2, %s439
        %p441 = scmp.lt.s32.totalorder %s31, 1
        %s442 = scalar_select %p441, %s31, 1
        %p443 = scmp.lt.s32.totalorder %s33, 0
        %s444 = scalar_select %p443, %s33, 0
        %s445 = sadd.s32 %s444, %s442
        %s446 = smul.addr %s445, 4
        %s447 = scalar_lea.vmem %s3, %s446
        %p449 = scmp.eq.s32.totalorder %s33, 0
        // Predicated region
        $region61: #{multi_head_attention_forward.3} parent=51 // pred_check
          %p450 = pneg %p449
        $region62: #{multi_head_attention_forward.3} parent=51 // pred_check_branch
          %452 = sbr.rel (%p450) target = $region64
        $region63: #{multi_head_attention_forward.3} parent=51 // pred_region
          %v453 = vld [vmem:[%s433] sm:$0xf]
          %455 = vrot.lane.b32.xlu0 %v453, 120
          %v456 = vpop.permute.xlu0 %455
          %458 = vrot.lane.b32.xlu0 %v453, 112
          %v459 = vpop.permute.xlu0 %458
          %461 = vrot.lane.b32.xlu0 %v453, 104
          %v462 = vpop.permute.xlu0 %461
          %vm464 = vcmask 60416
          %465 = vst.msk [vmem:[#allocation2] sm:$0xf] %vm464, %v453
          %466 = vst.msk [vmem:[#allocation2 + $0x4] sm:$0xf] %vm464, %v456
          %467 = vst.msk [vmem:[#allocation2 + $0x8] sm:$0xf] %vm464, %v459
          %468 = vst.msk [vmem:[#allocation2 + $0xc] sm:$0xf] %vm464, %v462
          %vm469 = vcmask 7168
          %470 = vst.msk [vmem:[#allocation3] sm:$0xff] %vm469, -inf
          %471 = vst.msk [vmem:[#allocation3 + $0x8] sm:$0xff] %vm469, -inf
          %472 = vst.msk [vmem:[#allocation3 + $0x10] sm:$0xff] %vm469, -inf
          %473 = vst.msk [vmem:[#allocation3 + $0x18] sm:$0xff] %vm469, -inf
          %474 = vst.msk [vmem:[#allocation4] sm:$0xff] %vm469, 0.0
          %475 = vst.msk [vmem:[#allocation4 + $0x8] sm:$0xff] %vm469, 0.0
          %476 = vst.msk [vmem:[#allocation4 + $0x10] sm:$0xff] %vm469, 0.0
          %477 = vst.msk [vmem:[#allocation4 + $0x18] sm:$0xff] %vm469, 0.0
          %vm478 = vcmask 64512
          %479 = vst.msk [vmem:[#allocation5] sm:$0xff] %vm478, 0.0
          %480 = vst.msk [vmem:[#allocation5 + $0x8] sm:$0xff] %vm478, 0.0
          %481 = vst.msk [vmem:[#allocation5 + $0x10] sm:$0xff] %vm478, 0.0
          %482 = vst.msk [vmem:[#allocation5 + $0x18] sm:$0xff] %vm478, 0.0
        $region64: #{multi_head_attention_forward.3} parent=51 // pred_fallthru
          _
        %v483 = vld [vmem:[%s440] sm:$0xf]
        %485 = vrot.lane.b32.xlu0 %v483, 120
        %v486 = vpop.permute.xlu0 %485
        %487 = vrot.lane.b32.xlu0 %v483, 112
        %v488 = vpop.permute.xlu0 %487
        %489 = vrot.lane.b32.xlu0 %v483, 104
        %v490 = vpop.permute.xlu0 %489
        %v491 = vld [vmem:[%s447] sm:$0xf]
        %493 = vrot.lane.b32.xlu0 %v491, 120
        %v494 = vpop.permute.xlu0 %493
        %495 = vrot.lane.b32.xlu0 %v491, 112
        %v496 = vpop.permute.xlu0 %495
        %497 = vrot.lane.b32.xlu0 %v491, 104
        %v498 = vpop.permute.xlu0 %497
        %v499 = vld [vmem:[#allocation2] sm:$0xf]
        %v500 = vld [vmem:[#allocation2 + $0x4] sm:$0xf]
        %v501 = vld [vmem:[#allocation2 + $0x8] sm:$0xf]
        %v502 = vld [vmem:[#allocation2 + $0xc] sm:$0xf]
        %vm503 = vcmask 64512
        %v505 = vsel %vm503, %v499, 0
        %v508 = vsel %vm503, %v483, 0
        %510 = vmatpush.bf16.xpose.msra.mxu0 0
        %511 = vmatpush.bf16.xpose.msra.mxu0 0
        %512 = vmatpush.bf16.xpose.msra.mxu0 0
        %513 = vmatpush.bf16.xpose.msra.mxu0 0
        %514 = vmatpush.bf16.xpose.msra.mxu0 0
        %515 = vmatpush.bf16.xpose.msra.mxu0 0
        %516 = vmatpush.bf16.xpose.msra.mxu0 0
        %517 = vmatpush.bf16.xpose.msra.mxu0 %v508
        %518 = vmatmul.bf16.gmra.mxu0 %v505
        %v519 = vpop.f32.mrf.mxu0
        %v520 = vadd.f32 0.0, %v519
        %v521 = vpop.f32.mrf.mxu0
        %522 = vdwg.mxu0
        %v524 = vsel %vm503, %v500, 0
        %v527 = vsel %vm503, %v486, 0
        %529 = vmatpush.bf16.xpose.msra.mxu0 0
        %530 = vmatpush.bf16.xpose.msra.mxu0 0
        %531 = vmatpush.bf16.xpose.msra.mxu0 0
        %532 = vmatpush.bf16.xpose.msra.mxu0 0
        %533 = vmatpush.bf16.xpose.msra.mxu0 0
        %534 = vmatpush.bf16.xpose.msra.mxu0 0
        %535 = vmatpush.bf16.xpose.msra.mxu0 0
        %536 = vmatpush.bf16.xpose.msra.mxu0 %v527
        %537 = vmatmul.bf16.gmra.mxu0 %v524
        %v538 = vpop.f32.mrf.mxu0
        %v539 = vadd.f32 0.0, %v538
        %v540 = vpop.f32.mrf.mxu0
        %541 = vdwg.mxu0
        %v543 = vsel %vm503, %v501, 0
        %v546 = vsel %vm503, %v488, 0
        %548 = vmatpush.bf16.xpose.msra.mxu0 0
        %549 = vmatpush.bf16.xpose.msra.mxu0 0
        %550 = vmatpush.bf16.xpose.msra.mxu0 0
        %551 = vmatpush.bf16.xpose.msra.mxu0 0
        %552 = vmatpush.bf16.xpose.msra.mxu0 0
        %553 = vmatpush.bf16.xpose.msra.mxu0 0
        %554 = vmatpush.bf16.xpose.msra.mxu0 0
        %555 = vmatpush.bf16.xpose.msra.mxu0 %v546
        %556 = vmatmul.bf16.gmra.mxu0 %v543
        %v557 = vpop.f32.mrf.mxu0
        %v558 = vadd.f32 0.0, %v557
        %v559 = vpop.f32.mrf.mxu0
        %560 = vdwg.mxu0
        %v562 = vsel %vm503, %v502, 0
        %v565 = vsel %vm503, %v490, 0
        %567 = vmatpush.bf16.xpose.msra.mxu0 0
        %568 = vmatpush.bf16.xpose.msra.mxu0 0
        %569 = vmatpush.bf16.xpose.msra.mxu0 0
        %570 = vmatpush.bf16.xpose.msra.mxu0 0
        %571 = vmatpush.bf16.xpose.msra.mxu0 0
        %572 = vmatpush.bf16.xpose.msra.mxu0 0
        %573 = vmatpush.bf16.xpose.msra.mxu0 0
        %574 = vmatpush.bf16.xpose.msra.mxu0 %v565
        %575 = vmatmul.bf16.gmra.mxu0 %v562
        %v576 = vpop.f32.mrf.mxu0
        %v577 = vadd.f32 0.0, %v576
        %v578 = vpop.f32.mrf.mxu0
        %579 = vdwg.mxu0
        %v580 = vld [vmem:[#allocation3] sm:$0xff]
        %v581 = vld [vmem:[#allocation3 + $0x8] sm:$0xff]
        %v582 = vld [vmem:[#allocation3 + $0x10] sm:$0xff]
        %v583 = vld [vmem:[#allocation3 + $0x18] sm:$0xff]
        %v584 = vsel %vm503, %v520, -inf
        %585 = vmax.xlane.f32.xlu0 %v584
        %v586 = vpop.xlane.xlu0 %585
        %v587 = vsel %vm503, %v539, -inf
        %588 = vmax.xlane.f32.xlu0 %v587
        %v589 = vpop.xlane.xlu0 %588
        %v590 = vsel %vm503, %v558, -inf
        %591 = vmax.xlane.f32.xlu0 %v590
        %v592 = vpop.xlane.xlu0 %591
        %v593 = vsel %vm503, %v577, -inf
        %594 = vmax.xlane.f32.xlu0 %v593
        %v595 = vpop.xlane.xlu0 %594
        %v596 = vmax.f32 %v580, %v586
        %v597 = vmax.f32 %v581, %v589
        %v598 = vmax.f32 %v582, %v592
        %v599 = vmax.f32 %v583, %v595
        %v600 = vsub.f32 %v580, %v596
        %v601 = vsub.f32 %v581, %v597
        %v602 = vsub.f32 %v582, %v598
        %v603 = vsub.f32 %v583, %v599
        %v604 = vmul.f32 %v600, 1.442695
        %v605 = vpow.pop %v604
        %v606 = vmul.f32 %v601, 1.442695
        %v607 = vpow.pop %v606
        %v608 = vmul.f32 %v602, 1.442695
        %v609 = vpow.pop %v608
        %v610 = vmul.f32 %v603, 1.442695
        %v611 = vpow.pop %v610
        %613 = vset.pattern.permute.xlu0 0
        %614 = vperm.xlu0 %613, %v596
        %v615 = vpop.permute.xlu0 %614
        %618 = vset.pattern.permute.xlu0 0
        %619 = vperm.xlu0 %618, %v597
        %v620 = vpop.permute.xlu0 %619
        %623 = vset.pattern.permute.xlu0 0
        %624 = vperm.xlu0 %623, %v598
        %v625 = vpop.permute.xlu0 %624
        %628 = vset.pattern.permute.xlu0 0
        %629 = vperm.xlu0 %628, %v599
        %v630 = vpop.permute.xlu0 %629
        %v632 = vsub.f32 %v520, %v615
        %v633 = vsub.f32 %v539, %v620
        %v634 = vsub.f32 %v558, %v625
        %v635 = vsub.f32 %v577, %v630
        %v636 = vmul.f32 %v632, 1.442695
        %v637 = vpow.pop %v636
        %v638 = vmul.f32 %v633, 1.442695
        %v639 = vpow.pop %v638
        %v640 = vmul.f32 %v634, 1.442695
        %v641 = vpow.pop %v640
        %v642 = vmul.f32 %v635, 1.442695
        %v643 = vpow.pop %v642
        %v644 = vld [vmem:[#allocation4] sm:$0xff]
        %v645 = vld [vmem:[#allocation4 + $0x8] sm:$0xff]
        %v646 = vld [vmem:[#allocation4 + $0x10] sm:$0xff]
        %v647 = vld [vmem:[#allocation4 + $0x18] sm:$0xff]
        %v648 = vmul.f32 %v605, %v644
        %v649 = vmul.f32 %v607, %v645
        %v650 = vmul.f32 %v609, %v646
        %v651 = vmul.f32 %v611, %v647
        %v652 = vsel %vm503, %v637, 0.0
        %653 = vadd.xlane.f32.xlu0 %v652
        %v654 = vpop.xlane.xlu0 %653
        %v655 = vsel %vm503, %v639, 0.0
        %656 = vadd.xlane.f32.xlu0 %v655
        %v657 = vpop.xlane.xlu0 %656
        %v658 = vsel %vm503, %v641, 0.0
        %659 = vadd.xlane.f32.xlu0 %v658
        %v660 = vpop.xlane.xlu0 %659
        %v661 = vsel %vm503, %v643, 0.0
        %662 = vadd.xlane.f32.xlu0 %v661
        %v663 = vpop.xlane.xlu0 %662
        %v664 = vadd.f32 %v648, %v654
        %v665 = vadd.f32 %v649, %v657
        %v666 = vadd.f32 %v650, %v660
        %v667 = vadd.f32 %v651, %v663
        %vm668 = vcmask 7168
        %669 = vst.msk [vmem:[#allocation4] sm:$0xff] %vm668, %v664
        %670 = vst.msk [vmem:[#allocation4 + $0x8] sm:$0xff] %vm668, %v665
        %671 = vst.msk [vmem:[#allocation4 + $0x10] sm:$0xff] %vm668, %v666
        %672 = vst.msk [vmem:[#allocation4 + $0x18] sm:$0xff] %vm668, %v667
        %v673 = vld [vmem:[#allocation5] sm:$0xff]
        %v674 = vld [vmem:[#allocation5 + $0x8] sm:$0xff]
        %v675 = vld [vmem:[#allocation5 + $0x10] sm:$0xff]
        %v676 = vld [vmem:[#allocation5 + $0x18] sm:$0xff]
        %678 = vset.pattern.permute.xlu0 0
        %679 = vperm.xlu0 %678, %v605
        %v680 = vpop.permute.xlu0 %679
        %683 = vset.pattern.permute.xlu0 0
        %684 = vperm.xlu0 %683, %v607
        %v685 = vpop.permute.xlu0 %684
        %688 = vset.pattern.permute.xlu0 0
        %689 = vperm.xlu0 %688, %v609
        %v690 = vpop.permute.xlu0 %689
        %693 = vset.pattern.permute.xlu0 0
        %694 = vperm.xlu0 %693, %v611
        %v695 = vpop.permute.xlu0 %694
        %v697 = vmul.f32 %v680, %v673
        %v698 = vmul.f32 %v685, %v674
        %v699 = vmul.f32 %v690, %v675
        %v700 = vmul.f32 %v695, %v676
        %v701 = vpack.c.bf16 %v637, %v637
        %v702 = vpack.c.bf16 %v639, %v639
        %v703 = vpack.c.bf16 %v641, %v641
        %v704 = vpack.c.bf16 %v643, %v643
        %v706 = vsel %vm503, %v701, 0
        %vm708 = vcmask 1043456
        %v710 = vsel %vm708, %v491, 0
        %712 = vmatpush.bf16.msra.mxu0 0
        %713 = vmatpush.bf16.msra.mxu0 0
        %714 = vmatpush.bf16.msra.mxu0 0
        %715 = vmatpush.bf16.msra.mxu0 0
        %716 = vmatpush.bf16.msra.mxu0 0
        %717 = vmatpush.bf16.msra.mxu0 0
        %718 = vmatpush.bf16.msra.mxu0 0
        %719 = vmatpush.bf16.msra.mxu0 %v710
        %720 = vmatmul.bf16.gmra.mxu0 %v706
        %v721 = vpop.f32.mrf.mxu0
        %v722 = vadd.f32 0.0, %v721
        %v723 = vpop.f32.mrf.mxu0
        %724 = vdwg.mxu0
        %v726 = vsel %vm503, %v702, 0
        %v729 = vsel %vm708, %v494, 0
        %731 = vmatpush.bf16.msra.mxu0 0
        %732 = vmatpush.bf16.msra.mxu0 0
        %733 = vmatpush.bf16.msra.mxu0 0
        %734 = vmatpush.bf16.msra.mxu0 0
        %735 = vmatpush.bf16.msra.mxu0 0
        %736 = vmatpush.bf16.msra.mxu0 0
        %737 = vmatpush.bf16.msra.mxu0 0
        %738 = vmatpush.bf16.msra.mxu0 %v729
        %739 = vmatmul.bf16.gmra.mxu0 %v726
        %v740 = vpop.f32.mrf.mxu0
        %v741 = vadd.f32 0.0, %v740
        %v742 = vpop.f32.mrf.mxu0
        %743 = vdwg.mxu0
        %v745 = vsel %vm503, %v703, 0
        %v748 = vsel %vm708, %v496, 0
        %750 = vmatpush.bf16.msra.mxu0 0
        %751 = vmatpush.bf16.msra.mxu0 0
        %752 = vmatpush.bf16.msra.mxu0 0
        %753 = vmatpush.bf16.msra.mxu0 0
        %754 = vmatpush.bf16.msra.mxu0 0
        %755 = vmatpush.bf16.msra.mxu0 0
        %756 = vmatpush.bf16.msra.mxu0 0
        %757 = vmatpush.bf16.msra.mxu0 %v748
        %758 = vmatmul.bf16.gmra.mxu0 %v745
        %v759 = vpop.f32.mrf.mxu0
        %v760 = vadd.f32 0.0, %v759
        %v761 = vpop.f32.mrf.mxu0
        %762 = vdwg.mxu0
        %v764 = vsel %vm503, %v704, 0
        %v767 = vsel %vm708, %v498, 0
        %769 = vmatpush.bf16.msra.mxu0 0
        %770 = vmatpush.bf16.msra.mxu0 0
        %771 = vmatpush.bf16.msra.mxu0 0
        %772 = vmatpush.bf16.msra.mxu0 0
        %773 = vmatpush.bf16.msra.mxu0 0
        %774 = vmatpush.bf16.msra.mxu0 0
        %775 = vmatpush.bf16.msra.mxu0 0
        %776 = vmatpush.bf16.msra.mxu0 %v767
        %777 = vmatmul.bf16.gmra.mxu0 %v764
        %v778 = vpop.f32.mrf.mxu0
        %v779 = vadd.f32 0.0, %v778
        %v780 = vpop.f32.mrf.mxu0
        %781 = vdwg.mxu0
        %v782 = vadd.f32 %v697, %v722
        %v783 = vadd.f32 %v698, %v741
        %v784 = vadd.f32 %v699, %v760
        %v785 = vadd.f32 %v700, %v779
        %786 = vst.msk [vmem:[#allocation5] sm:$0xff] %vm503, %v782
        %787 = vst.msk [vmem:[#allocation5 + $0x8] sm:$0xff] %vm503, %v783
        %788 = vst.msk [vmem:[#allocation5 + $0x10] sm:$0xff] %vm503, %v784
        %789 = vst.msk [vmem:[#allocation5 + $0x18] sm:$0xff] %vm503, %v785
        %790 = vst.msk [vmem:[#allocation3] sm:$0xff] %vm668, %v596
        %791 = vst.msk [vmem:[#allocation3 + $0x8] sm:$0xff] %vm668, %v597
        %792 = vst.msk [vmem:[#allocation3 + $0x10] sm:$0xff] %vm668, %v598
        %793 = vst.msk [vmem:[#allocation3 + $0x18] sm:$0xff] %vm668, %v599
        // Predicated region
        $region65: #{multi_head_attention_forward.3} parent=51 // pred_check
          %p794 = pneg %p449
        $region66: #{multi_head_attention_forward.3} parent=51 // pred_check_branch
          %796 = sbr.rel (%p794) target = $region68
        $region67: #{multi_head_attention_forward.3} parent=51 // pred_region
          %v797 = vld [vmem:[#allocation5] sm:$0xff]
          %v798 = vld [vmem:[#allocation5 + $0x8] sm:$0xff]
          %v799 = vld [vmem:[#allocation5 + $0x10] sm:$0xff]
          %v800 = vld [vmem:[#allocation5 + $0x18] sm:$0xff]
          %v801 = vld [vmem:[#allocation4] sm:$0xff]
          %v802 = vld [vmem:[#allocation4 + $0x8] sm:$0xff]
          %v803 = vld [vmem:[#allocation4 + $0x10] sm:$0xff]
          %v804 = vld [vmem:[#allocation4 + $0x18] sm:$0xff]
          %v805 = vrcp.pop %v801
          %v806 = vrcp.pop %v802
          %v807 = vrcp.pop %v803
          %v808 = vrcp.pop %v804
          %810 = vset.pattern.permute.xlu0 0
          %811 = vperm.xlu0 %810, %v805
          %v812 = vpop.permute.xlu0 %811
          %815 = vset.pattern.permute.xlu0 0
          %816 = vperm.xlu0 %815, %v806
          %v817 = vpop.permute.xlu0 %816
          %820 = vset.pattern.permute.xlu0 0
          %821 = vperm.xlu0 %820, %v807
          %v822 = vpop.permute.xlu0 %821
          %825 = vset.pattern.permute.xlu0 0
          %826 = vperm.xlu0 %825, %v808
          %v827 = vpop.permute.xlu0 %826
          %v829 = vmul.f32 %v797, %v812
          %v830 = vmul.f32 %v798, %v817
          %v831 = vmul.f32 %v799, %v822
          %v832 = vmul.f32 %v800, %v827
          %834 = vrot.lane.b32.xlu0 %v830, 8
          %v835 = vpop.permute.xlu0 %834
          %838 = vrot.lane.b32.xlu0 %v831, 16
          %v839 = vpop.permute.xlu0 %838
          %842 = vrot.lane.b32.xlu0 %v832, 24
          %v843 = vpop.permute.xlu0 %842
          %v845 = vsel %vm503, %v829, %v835
          %vm846 = vcmask 130048
          %v847 = vsel %vm846, %v845, %v839
          %vm848 = vcmask 195584
          %v849 = vsel %vm848, %v847, %v843
          %v850 = vpack.c.bf16 %v849, %v849
          %v851 = vld [vmem:[#allocation9] sm:$0xf]
          %v852 = vld [vmem:[#allocation9 + $0x4] sm:$0xf]
          %v853 = vld [vmem:[#allocation9 + $0x8] sm:$0xf]
          %v854 = vld [vmem:[#allocation9 + $0xc] sm:$0xf]
          %v855 = vld [vmem:[%s5] sm:$0x1]
          %v857 = vperm.slane %v855, 0
          %v863 = vunpack.c.l.b16 %v851
          %v864 = vunpack.c.l.b16 %v852
          %v865 = vunpack.c.l.b16 %v853
          %v866 = vunpack.c.l.b16 %v854
          %v867 = vpack.c.b16 %v864, %v863
          %v868 = vpack.c.b16 %v866, %v865
          %vm871 = vcmask 261120
          %v873 = vsel %vm871, %v850, 0
          %875 = vmatpush.bf16.msra.mxu0 0
          %876 = vmatpush.bf16.msra.mxu0 0
          %877 = vmatpush.bf16.msra.mxu0 0
          %878 = vmatpush.bf16.msra.mxu0 0
          %879 = vmatpush.bf16.msra.mxu0 0
          %880 = vmatpush.bf16.msra.mxu0 0
          %881 = vmatpush.bf16.msra.mxu0 %v868
          %882 = vmatpush.bf16.msra.mxu0 %v867
          %883 = vmatmul.bf16.gmra.mxu0 %v873
          %v884 = vpop.f32.mrf.mxu0
          %v885 = vadd.f32 %v857, %v884
          %v886 = vpop.f32.mrf.mxu0
          %887 = vdwg.mxu0
          %v888 = vld [vmem:[%s367] sm:$0xff]
          %v889 = vadd.f32 %v885, %v888
          %v890 = vsel %vm871, %v889, 0.0
          %891 = vadd.xlane.f32.xlu0 %v890
          %v892 = vpop.xlane.xlu0 %891
          %v893 = vrcp.pop 32.0
          %v894 = vmul.f32 32.0, %v893
          %v895 = vsub.f32 1.0, %v894
          %v896 = vmul.f32 %v893, %v895
          %v897 = vadd.f32 %v893, %v896
          %vm898 = vweird.f32 %v893
          %v899 = vsel %vm898, %v893, %v897
          %v900 = vmul.f32 %v892, %v899
          %v901 = vmul.f32 %v889, %v889
          %v902 = vsel %vm871, %v901, 0.0
          %903 = vadd.xlane.f32.xlu0 %v902
          %v904 = vpop.xlane.xlu0 %903
          %v905 = vmul.f32 %v904, %v899
          %v906 = vmul.f32 %v900, %v900
          %v907 = vsub.f32 %v905, %v906
          %v908 = vsub.f32 %v889, %v900
          %v909 = vadd.f32 %v907, 1e-05
          %v910 = vrsqrt.pop %v909
          %v911 = vmul.f32 %v910, %v909
          %v912 = vmul.f32 %v911, %v910
          %v913 = vmul.f32 0.5, %v912
          %v914 = vsub.f32 1.5, %v913
          %v915 = vmul.f32 %v910, %v914
          %vm916 = vweird.f32 %v909
          %vm917 = vweird.f32 %v910
          %vm918 = vmor %vm916, %vm917
          %v919 = vsel %vm918, %v910, %v915
          %v920 = vmul.f32 %v908, %v919
          %v921 = vld [vmem:[%s6] sm:$0x1]
          %v923 = vperm.slane %v921, 0
          %v925 = vmul.f32 %v920, %v923
          %v926 = vld [vmem:[%s7] sm:$0x1]
          %v928 = vperm.slane %v926, 0
          %v930 = vadd.f32 %v925, %v928
          %931 = vst.msk [vmem:[%s426] sm:$0xff] %vm871, %v930
        $region68: #{multi_head_attention_forward.3} parent=51 // pred_fallthru
          _
        %s932 = sand.u32 %s251, 1
        %s933 = scalar_lea.sflag [#allocation8], %s932
        %s934 = sand.u32 %s251, 1
        %s935 = smul.addr %s934, 8
        %s936 = scalar_lea.vmem [#allocation11], %s935
        // Predicated region
        $region69: #{multi_head_attention_forward.3} parent=51 // pred_check
          %p937 = pneg %p261
        $region70: #{multi_head_attention_forward.3} parent=51 // pred_check_branch
          %939 = sbr.rel (%p937) target = $region72
        $region71: #{multi_head_attention_forward.3} parent=51 // pred_region
          %941 = vsyncadd %s933, 0
          %s942 = sadd.s32 %s32, %s31
          %s943 = smul.addr %s942, 8
          %s944 = scalar_lea.hbm %s8, %s943
          %s946 = sshll.u32 %s936, 4
          %s947 = int_to_ptr.vmem [resolvable:$true] %s946
          %s948 = sshll.u32 %s944, 4
          %s949 = int_to_ptr.hbm [resolvable:$true] %s948
          %951 = dma.vmem_to_hbm [thread:$0]  %s947, 128, %s949, %s933
        $region72: #{multi_head_attention_forward.3} parent=51 // pred_fallthru
          _
      $region52: #{multi_head_attention_forward.3} parent=5 // pred_fallthru
        _
      %p952 = scmp.le.s32.totalorder 2, %s21
      // Predicated region
      $region73: #{multi_head_attention_forward.3} parent=5 // pred_check
        %p953 = pneg %p952
      $region74: #{multi_head_attention_forward.3} parent=5 // pred_check_branch
        %955 = sbr.rel (%p953) target = $region76
      $region75: #{multi_head_attention_forward.3} parent=5 // pred_region
        %s956 = ssub.s32 %s21, 2
        // Predicated region
        $region77: #{multi_head_attention_forward.3} parent=75 // pred_check
          %p957 = pneg %p267
        $region78: #{multi_head_attention_forward.3} parent=75 // pred_check_branch
          %959 = sbr.rel (%p957) target = $region80
        $region79: #{multi_head_attention_forward.3} parent=75 // pred_region
          %s960 = sand.u32 %s252, 1
          %s961 = scalar_lea.sflag [#allocation8], %s960
          %s962 = sand.u32 %s252, 1
          %s963 = smul.addr %s962, 8
          %s964 = scalar_lea.vmem [#allocation11], %s963
          %966 = dma.done %s961, 128
        $region80: #{multi_head_attention_forward.3} parent=75 // pred_fallthru
          _
      $region76: #{multi_head_attention_forward.3} parent=5 // pred_fallthru
        _
    $region6: #{multi_head_attention_forward.3} parent=1 // loop_footer
      %s25 = sadd.s32 1, %s21
    $region7: #{multi_head_attention_forward.3} parent=1 // loop_footer_branch
      %20 = sbr.rel target = $region3
    $region8: #{multi_head_attention_forward.3} parent=1 // loop_exit
      _
    %967 = vsyncpa [#allocation7], 1
    %s968 = scalar_lea.sflag [#allocation7], 1
    %969 = vsyncpa %s968, 1
    %970 = vsyncpa [#allocation10], 1
    %971 = vsyncpa [#allocation8], 1
    %s972 = scalar_lea.sflag [#allocation8], 1
    %973 = vsyncpa %s972, 1

// kernel: multi_head_attention_forward.2
$region0: #{multi_head_attention_forward.2}
  #allocation0 [shape = 'u32[]', space=smem, size = 0x4, offset = 0x4, fixed_abs, tag = 'smem constant byte address 0x4 - core index']
  #allocation1 [shape = 'u32[72,128]{1,0:T(1,128)}', space=vmem, size = 0x9000, scoped, tag = 'internal scratch']
  %s0 = inlined_call_operand.hbm [shape: f32[2,8,32], index: 0, kind: input, shape index: {}]
  %s1 = inlined_call_operand.hbm [shape: bf16[32,96], index: 1, kind: input, shape index: {}]
  %s2 = inlined_call_operand.vmem [shape: f32[1,96], index: 2, kind: input, shape index: {}]
  %s3 = inlined_call_operand.vmem [shape: bf16[2,8,32], index: 3, kind: output, shape index: {0}]
  %s4 = inlined_call_operand.vmem [shape: bf16[2,8,32], index: 4, kind: output, shape index: {1}]
  %s5 = inlined_call_operand.vmem [shape: bf16[2,8,32], index: 5, kind: output, shape index: {2}]
  %6 = xla_tuple %s3, %s4, %s5
  %s7 = sld [smem:[#allocation0]]
  $region69: #{multi_head_attention_forward.2} parent=0
    _
  %s9 = ssub.s32 1, %s7
  %s10 = scalar_select 0, %s9, %s7
  $region1: #{multi_head_attention_forward.2} parent=0
    #allocation2 [shape = 'u8[8192]{0}', space=vmem, size = 0x2000, scoped, tag = 'input window, operand 0']
    #allocation3 [shape = 's32[2]{0}', space=sflag, size = 0x8, scoped, tag = 'scoped memory for multi_head_attention_forward.2']
    #allocation4 [shape = 'u8[8192]{0}', space=vmem, size = 0x2000, scoped, tag = 'input window, operand 1, single buffered']
    #allocation5 [shape = 's32[1]{0}', space=sflag, size = 0x4, scoped, tag = 'scoped memory for multi_head_attention_forward.2']
    %11 = vsyncpa [#allocation3], 0
    %s12 = scalar_lea.sflag [#allocation3], 1
    %13 = vsyncpa %s12, 0
    %14 = vsyncpa [#allocation5], 0
    loop: start=0, step=1, limit=4
    $region2: #{multi_head_attention_forward.2} parent=1 // loop_pre_header
      _
    $region3: #{multi_head_attention_forward.2} parent=1 // loop_header
      %s16 = sphi 0, %s20
      %p17 = scmp.ge.s32.totalorder %s16, 4
      %s23 = sphi 0, %s35
      %s24 = sphi 0, %s31
      %s25 = sphi 0, %s23
      %s26 = sphi 0, %s24
      %s27 = sphi 0, %s25
      %s28 = sphi 0, %s26
      %s40 = sphi 0, %s42
      %s43 = sphi 0, %s40
      %s44 = sphi 0, %s43
      %s60 = sphi 0, %s44
      %s64 = sphi 0, %s64
      %s66 = sphi 0, %s64
      %s67 = sphi 0, %s66
      %s81 = sphi 0, %s67
      %s85 = sphi 0, %s85
      %s87 = sphi 0, %s85
      %s88 = sphi 0, %s87
      %s102 = sphi 0, %s88
      %s110 = sphi 0, %s112
      %s113 = sphi 0, %s110
      %s114 = sphi 0, %s113
      %s130 = sphi 0, %s114
      %s138 = sphi 0, %s140
      %s141 = sphi 0, %s138
      %s142 = sphi 0, %s141
      %s158 = sphi 0, %s142
      %s166 = sphi 0, %s168
      %s169 = sphi 0, %s166
      %s170 = sphi 0, %s169
      %s186 = sphi 0, %s170
    $region4: #{multi_head_attention_forward.2} parent=1 // loop_header_branch
      %19 = sbr.rel (%p17) target = $region8
    $region5: #{multi_head_attention_forward.2} parent=1 // loop_body
      %s21 = ssub.s32 %s16, 1
      %s22 = ssub.s32 %s16, 2
      %s29 = sadd.s32 1, %s24
      %p30 = scmp.ge.s32.totalorder %s29, 1
      %s31 = scalar_select %p30, 0, %s29
      %s32 = sadd.s32 1, %s23
      %s33 = scalar_select %p30, %s32, %s23
      %p34 = scmp.ge.s32.totalorder %s33, 2
      %s35 = scalar_select %p34, 0, %s33
      %s36 = ssub.s32 %s23, %s35
      %s37 = ssub.s32 %s24, %s31
      %s38 = sor.u32 %s36, %s37
      %p39 = scmp.eq.s32.totalorder %s38, 0
      %s41 = sadd.s32 %s40, 1
      %s42 = scalar_select %p39, %s40, %s41
      %p45 = pneg %p39
      %p46 = scmp.eq.s32.totalorder %s16, 1
      %p47 = por %p45, %p46
      %p48 = scmp.ne.s32.totalorder %s40, %s43
      %p49 = scmp.eq.s32.totalorder %s16, 0
      %p50 = por %p48, %p49
      %p51 = scmp.ne.s32.totalorder %s40, %s43
      %p52 = scmp.eq.s32.totalorder %s21, 1
      %p53 = por %p51, %p52
      %p54 = scmp.ne.s32.totalorder %s43, %s44
      %p55 = scmp.eq.s32.totalorder %s21, 0
      %p56 = por %p54, %p55
      %p57 = scmp.ne.s32.totalorder %s43, %s44
      %p58 = scmp.eq.s32.totalorder %s22, 1
      %p59 = por %p57, %p58
      %p61 = scmp.ne.s32.totalorder %s44, %s60
      %p62 = scmp.eq.s32.totalorder %s22, 0
      %p63 = por %p61, %p62
      %s65 = sadd.s32 %s64, 1
      %p68 = scmp.eq.s32.totalorder %s16, 1
      %p69 = scmp.ne.s32.totalorder %s64, %s66
      %p70 = scmp.eq.s32.totalorder %s16, 0
      %p71 = por %p69, %p70
      %p72 = scmp.ne.s32.totalorder %s64, %s66
      %p73 = scmp.eq.s32.totalorder %s21, 1
      %p74 = por %p72, %p73
      %p75 = scmp.ne.s32.totalorder %s66, %s67
      %p76 = scmp.eq.s32.totalorder %s21, 0
      %p77 = por %p75, %p76
      %p78 = scmp.ne.s32.totalorder %s66, %s67
      %p79 = scmp.eq.s32.totalorder %s22, 1
      %p80 = por %p78, %p79
      %p82 = scmp.ne.s32.totalorder %s67, %s81
      %p83 = scmp.eq.s32.totalorder %s22, 0
      %p84 = por %p82, %p83
      %s86 = sadd.s32 %s85, 1
      %p89 = scmp.eq.s32.totalorder %s16, 1
      %p90 = scmp.ne.s32.totalorder %s85, %s87
      %p91 = scmp.eq.s32.totalorder %s16, 0
      %p92 = por %p90, %p91
      %p93 = scmp.ne.s32.totalorder %s85, %s87
      %p94 = scmp.eq.s32.totalorder %s21, 1
      %p95 = por %p93, %p94
      %p96 = scmp.ne.s32.totalorder %s87, %s88
      %p97 = scmp.eq.s32.totalorder %s21, 0
      %p98 = por %p96, %p97
      %p99 = scmp.ne.s32.totalorder %s87, %s88
      %p100 = scmp.eq.s32.totalorder %s22, 1
      %p101 = por %p99, %p100
      %p103 = scmp.ne.s32.totalorder %s88, %s102
      %p104 = scmp.eq.s32.totalorder %s22, 0
      %p105 = por %p103, %p104
      %s106 = ssub.s32 %s23, %s35
      %s107 = ssub.s32 %s24, %s31
      %s108 = sor.u32 %s106, %s107
      %p109 = scmp.eq.s32.totalorder %s108, 0
      %s111 = sadd.s32 %s110, 1
      %s112 = scalar_select %p109, %s110, %s111
      %p115 = pneg %p109
      %p116 = scmp.eq.s32.totalorder %s16, 1
      %p117 = por %p115, %p116
      %p118 = scmp.ne.s32.totalorder %s110, %s113
      %p119 = scmp.eq.s32.totalorder %s16, 0
      %p120 = por %p118, %p119
      %p121 = scmp.ne.s32.totalorder %s110, %s113
      %p122 = scmp.eq.s32.totalorder %s21, 1
      %p123 = por %p121, %p122
      %p124 = scmp.ne.s32.totalorder %s113, %s114
      %p125 = scmp.eq.s32.totalorder %s21, 0
      %p126 = por %p124, %p125
      %p127 = scmp.ne.s32.totalorder %s113, %s114
      %p128 = scmp.eq.s32.totalorder %s22, 1
      %p129 = por %p127, %p128
      %p131 = scmp.ne.s32.totalorder %s114, %s130
      %p132 = scmp.eq.s32.totalorder %s22, 0
      %p133 = por %p131, %p132
      %s134 = ssub.s32 %s23, %s35
      %s135 = ssub.s32 %s24, %s31
      %s136 = sor.u32 %s134, %s135
      %p137 = scmp.eq.s32.totalorder %s136, 0
      %s139 = sadd.s32 %s138, 1
      %s140 = scalar_select %p137, %s138, %s139
      %p143 = pneg %p137
      %p144 = scmp.eq.s32.totalorder %s16, 1
      %p145 = por %p143, %p144
      %p146 = scmp.ne.s32.totalorder %s138, %s141
      %p147 = scmp.eq.s32.totalorder %s16, 0
      %p148 = por %p146, %p147
      %p149 = scmp.ne.s32.totalorder %s138, %s141
      %p150 = scmp.eq.s32.totalorder %s21, 1
      %p151 = por %p149, %p150
      %p152 = scmp.ne.s32.totalorder %s141, %s142
      %p153 = scmp.eq.s32.totalorder %s21, 0
      %p154 = por %p152, %p153
      %p155 = scmp.ne.s32.totalorder %s141, %s142
      %p156 = scmp.eq.s32.totalorder %s22, 1
      %p157 = por %p155, %p156
      %p159 = scmp.ne.s32.totalorder %s142, %s158
      %p160 = scmp.eq.s32.totalorder %s22, 0
      %p161 = por %p159, %p160
      %s162 = ssub.s32 %s23, %s35
      %s163 = ssub.s32 %s24, %s31
      %s164 = sor.u32 %s162, %s163
      %p165 = scmp.eq.s32.totalorder %s164, 0
      %s167 = sadd.s32 %s166, 1
      %s168 = scalar_select %p165, %s166, %s167
      %p171 = pneg %p165
      %p172 = scmp.eq.s32.totalorder %s16, 1
      %p173 = por %p171, %p172
      %p174 = scmp.ne.s32.totalorder %s166, %s169
      %p175 = scmp.eq.s32.totalorder %s16, 0
      %p176 = por %p174, %p175
      %p177 = scmp.ne.s32.totalorder %s166, %s169
      %p178 = scmp.eq.s32.totalorder %s21, 1
      %p179 = por %p177, %p178
      %p180 = scmp.ne.s32.totalorder %s169, %s170
      %p181 = scmp.eq.s32.totalorder %s21, 0
      %p182 = por %p180, %p181
      %p183 = scmp.ne.s32.totalorder %s169, %s170
      %p184 = scmp.eq.s32.totalorder %s22, 1
      %p185 = por %p183, %p184
      %p187 = scmp.ne.s32.totalorder %s170, %s186
      %p188 = scmp.eq.s32.totalorder %s22, 0
      %p189 = por %p187, %p188
      %p190 = scmp.le.s32.totalorder 1, %s16
      %p191 = scmp.lt.s32.totalorder %s16, 3
      %p192 = pnand %p190, %p191
      %p193 = pneg %p192
      // Predicated region
      $region9: #{multi_head_attention_forward.2} parent=5 // pred_check
        _
      $region10: #{multi_head_attention_forward.2} parent=5 // pred_check_branch
        %195 = sbr.rel (%p192) target = $region12
      $region11: #{multi_head_attention_forward.2} parent=5 // pred_region
        %s196 = ssub.s32 %s16, 1
        // Predicated region
        $region13: #{multi_head_attention_forward.2} parent=11 // pred_check
          %p197 = pneg %p77
        $region14: #{multi_head_attention_forward.2} parent=11 // pred_check_branch
          %199 = sbr.rel (%p197) target = $region16
        $region15: #{multi_head_attention_forward.2} parent=11 // pred_region
          %201 = vsyncadd [#allocation5], 0
          %s202 = sshll.u32 %s1, 4
          %s203 = int_to_ptr.hbm [resolvable:$true] %s202
          %s204 = sshll.u32 [#allocation4], 4
          %s205 = int_to_ptr.vmem [resolvable:$true] %s204
          %210 = dma.hbm_to_vmem [thread:$0]  %s203, 256, %s205, [#allocation5], 64, 64, 4
        $region16: #{multi_head_attention_forward.2} parent=11 // pred_fallthru
          _
        // Predicated region
        $region17: #{multi_head_attention_forward.2} parent=11 // pred_check
          %p211 = pneg %p98
        $region18: #{multi_head_attention_forward.2} parent=11 // pred_check_branch
          %213 = sbr.rel (%p211) target = $region20
        $region19: #{multi_head_attention_forward.2} parent=11 // pred_region
          _
        $region20: #{multi_head_attention_forward.2} parent=11 // pred_fallthru
          _
      $region12: #{multi_head_attention_forward.2} parent=5 // pred_fallthru
        _
      %p214 = scmp.lt.s32.totalorder %s16, 2
      // Predicated region
      $region21: #{multi_head_attention_forward.2} parent=5 // pred_check
        %p215 = pneg %p214
      $region22: #{multi_head_attention_forward.2} parent=5 // pred_check_branch
        %217 = sbr.rel (%p215) target = $region24
      $region23: #{multi_head_attention_forward.2} parent=5 // pred_region
        // Predicated region
        $region25: #{multi_head_attention_forward.2} parent=23 // pred_check
          %p218 = pneg %p50
        $region26: #{multi_head_attention_forward.2} parent=23 // pred_check_branch
          %220 = sbr.rel (%p218) target = $region28
        $region27: #{multi_head_attention_forward.2} parent=23 // pred_region
          %s221 = sand.u32 %s40, 1
          %s222 = scalar_lea.sflag [#allocation3], %s221
          %s223 = sand.u32 %s40, 1
          %s224 = smul.addr %s223, 8
          %s225 = scalar_lea.vmem [#allocation2], %s224
          %227 = vsyncadd %s222, 0
          %s228 = sadd.s32 %s24, %s23
          %s229 = smul.addr %s228, 8
          %s230 = scalar_lea.hbm %s0, %s229
          %s232 = sshll.u32 %s230, 4
          %s233 = int_to_ptr.hbm [resolvable:$true] %s232
          %s234 = sshll.u32 %s225, 4
          %s235 = int_to_ptr.vmem [resolvable:$true] %s234
          %237 = dma.hbm_to_vmem [thread:$0]  %s233, 128, %s235, %s222
        $region28: #{multi_head_attention_forward.2} parent=23 // pred_fallthru
          _
      $region24: #{multi_head_attention_forward.2} parent=5 // pred_fallthru
        _
      %p238 = scmp.le.s32.totalorder 1, %s16
      %p239 = scmp.lt.s32.totalorder %s16, 3
      %p240 = pnand %p238, %p239
      %p241 = pneg %p240
      // Predicated region
      $region29: #{multi_head_attention_forward.2} parent=5 // pred_check
        _
      $region30: #{multi_head_attention_forward.2} parent=5 // pred_check_branch
        %243 = sbr.rel (%p240) target = $region32
      $region31: #{multi_head_attention_forward.2} parent=5 // pred_region
        %s244 = ssub.s32 %s16, 1
        %s245 = sand.u32 %s43, 1
        %s246 = scalar_lea.sflag [#allocation3], %s245
        %s247 = sand.u32 %s43, 1
        %s248 = smul.addr %s247, 8
        %s249 = scalar_lea.vmem [#allocation2], %s248
        // Predicated region
        $region33: #{multi_head_attention_forward.2} parent=31 // pred_check
          %p250 = pneg %p56
        $region34: #{multi_head_attention_forward.2} parent=31 // pred_check_branch
          %252 = sbr.rel (%p250) target = $region36
        $region35: #{multi_head_attention_forward.2} parent=31 // pred_region
          %254 = dma.done %s246, 128
        $region36: #{multi_head_attention_forward.2} parent=31 // pred_fallthru
          _
        // Predicated region
        $region37: #{multi_head_attention_forward.2} parent=31 // pred_check
          %p255 = pneg %p77
        $region38: #{multi_head_attention_forward.2} parent=31 // pred_check_branch
          %257 = sbr.rel (%p255) target = $region40
        $region39: #{multi_head_attention_forward.2} parent=31 // pred_region
          %259 = dma.done [#allocation5], 256
        $region40: #{multi_head_attention_forward.2} parent=31 // pred_fallthru
          _
        %s260 = sand.u32 %s43, 1
        %s261 = scalar_lea.sflag [#allocation3], %s260
        %s262 = sand.u32 %s43, 1
        %s263 = smul.addr %s262, 8
        %s264 = scalar_lea.vmem [#allocation2], %s263
        %p265 = pneg %p56
        %p266 = pneg %p53
        %p267 = pneg %p77
        %p268 = pneg %p74
        %p269 = pneg %p98
        %p270 = pneg %p95
        %p271 = pneg %p126
        %p272 = pneg %p123
        %p273 = scmp.lt.s32.totalorder %s25, 1
        %s274 = scalar_select %p273, %s25, 1
        %p275 = scmp.lt.s32.totalorder %s26, 0
        %s276 = scalar_select %p275, %s26, 0
        %s277 = sadd.s32 %s276, %s274
        %s278 = smul.addr %s277, 4
        %s279 = scalar_lea.vmem %s3, %s278
        %p280 = pneg %p154
        %p281 = pneg %p151
        %p282 = scmp.lt.s32.totalorder %s25, 1
        %s283 = scalar_select %p282, %s25, 1
        %p284 = scmp.lt.s32.totalorder %s26, 0
        %s285 = scalar_select %p284, %s26, 0
        %s286 = sadd.s32 %s285, %s283
        %s287 = smul.addr %s286, 4
        %s288 = scalar_lea.vmem %s4, %s287
        %p289 = pneg %p182
        %p290 = pneg %p179
        %p291 = scmp.lt.s32.totalorder %s25, 1
        %s292 = scalar_select %p291, %s25, 1
        %p293 = scmp.lt.s32.totalorder %s26, 0
        %s294 = scalar_select %p293, %s26, 0
        %s295 = sadd.s32 %s294, %s292
        %s296 = smul.addr %s295, 4
        %s297 = scalar_lea.vmem %s5, %s296
        %p298 = scmp.lt.s32.totalorder %s25, 1
        %s299 = scalar_select %p298, %s25, 1
        %p300 = scmp.lt.s32.totalorder %s26, 0
        %s301 = scalar_select %p300, %s26, 0
        %s302 = sadd.s32 %s301, %s299
        %s303 = smul.addr %s302, 4
        %s304 = scalar_lea.vmem %s3, %s303
        %p305 = scmp.lt.s32.totalorder %s25, 1
        %s306 = scalar_select %p305, %s25, 1
        %p307 = scmp.lt.s32.totalorder %s26, 0
        %s308 = scalar_select %p307, %s26, 0
        %s309 = sadd.s32 %s308, %s306
        %s310 = smul.addr %s309, 4
        %s311 = scalar_lea.vmem %s4, %s310
        %p312 = scmp.lt.s32.totalorder %s25, 1
        %s313 = scalar_select %p312, %s25, 1
        %p314 = scmp.lt.s32.totalorder %s26, 0
        %s315 = scalar_select %p314, %s26, 0
        %s316 = sadd.s32 %s315, %s313
        %s317 = smul.addr %s316, 4
        %s318 = scalar_lea.vmem %s5, %s317
        %v320 = vld [vmem:[%s249] sm:$0xff]
        %v321 = vpack.c.bf16 %v320, %v320
        %v322 = vld [vmem:[#allocation4] sm:$0xf]
        %v323 = vld [vmem:[#allocation4 + $0x4] sm:$0xf]
        %v324 = vld [vmem:[#allocation4 + $0x8] sm:$0xf]
        %v325 = vld [vmem:[#allocation4 + $0xc] sm:$0xf]
        %v326 = vld [vmem:[%s2] sm:$0x1]
        %v328 = vperm.slane %v326, 0
        %v334 = vunpack.c.l.b16 %v322
        %v335 = vunpack.c.l.b16 %v323
        %v336 = vunpack.c.l.b16 %v324
        %v337 = vunpack.c.l.b16 %v325
        %v338 = vpack.c.b16 %v335, %v334
        %v339 = vpack.c.b16 %v337, %v336
        %vm342 = vcmask 261120
        %v344 = vsel %vm342, %v321, 0
        %346 = vmatpush.bf16.msra.mxu0 0
        %347 = vmatpush.bf16.msra.mxu0 0
        %348 = vmatpush.bf16.msra.mxu0 0
        %349 = vmatpush.bf16.msra.mxu0 0
        %350 = vmatpush.bf16.msra.mxu0 0
        %351 = vmatpush.bf16.msra.mxu0 0
        %352 = vmatpush.bf16.msra.mxu0 %v339
        %353 = vmatpush.bf16.msra.mxu0 %v338
        %354 = vmatmul.bf16.gmra.mxu0 %v344
        %v355 = vpop.f32.mrf.mxu0
        %v356 = vadd.f32 %v328, %v355
        %v357 = vpop.f32.mrf.mxu0
        %358 = vdwg.mxu0
        %v359 = vmul.f32 %v356, 0.35355338
        %v360 = vpack.c.bf16 %v359, %v359
        %vm361 = vcmask 257024
        %362 = vst.msk [vmem:[%s304] sm:$0xf] %vm361, %v360
        %v363 = vpack.c.bf16 %v356, %v356
        %365 = vrot.lane.b32.xlu0 %v363, 96
        %v366 = vpop.permute.xlu0 %365
        %368 = vst.msk [vmem:[%s311] sm:$0xf] %vm361, %v366
        %369 = vrot.lane.b32.xlu0 %v363, 64
        %v370 = vpop.permute.xlu0 %369
        %372 = vst.msk [vmem:[%s318] sm:$0xf] %vm361, %v370
        %p373 = scmp.lt.s32.totalorder %s25, 1
        %s374 = scalar_select %p373, %s25, 1
        %p375 = scmp.lt.s32.totalorder %s26, 0
        %s376 = scalar_select %p375, %s26, 0
        %s377 = sadd.s32 %s376, %s374
        %s378 = smul.addr %s377, 4
        %s379 = scalar_lea.vmem %s3, %s378
        %p380 = scmp.lt.s32.totalorder %s25, 1
        %s381 = scalar_select %p380, %s25, 1
        %p382 = scmp.lt.s32.totalorder %s26, 0
        %s383 = scalar_select %p382, %s26, 0
        %s384 = sadd.s32 %s383, %s381
        %s385 = smul.addr %s384, 4
        %s386 = scalar_lea.vmem %s4, %s385
        %p387 = scmp.lt.s32.totalorder %s25, 1
        %s388 = scalar_select %p387, %s25, 1
        %p389 = scmp.lt.s32.totalorder %s26, 0
        %s390 = scalar_select %p389, %s26, 0
        %s391 = sadd.s32 %s390, %s388
        %s392 = smul.addr %s391, 4
        %s393 = scalar_lea.vmem %s5, %s392
        // Predicated region
        $region41: #{multi_head_attention_forward.2} parent=31 // pred_check
          %p394 = pneg %p123
        $region42: #{multi_head_attention_forward.2} parent=31 // pred_check_branch
          %396 = sbr.rel (%p394) target = $region44
        $region43: #{multi_head_attention_forward.2} parent=31 // pred_region
          _
        $region44: #{multi_head_attention_forward.2} parent=31 // pred_fallthru
          _
        // Predicated region
        $region45: #{multi_head_attention_forward.2} parent=31 // pred_check
          %p397 = pneg %p151
        $region46: #{multi_head_attention_forward.2} parent=31 // pred_check_branch
          %399 = sbr.rel (%p397) target = $region48
        $region47: #{multi_head_attention_forward.2} parent=31 // pred_region
          _
        $region48: #{multi_head_attention_forward.2} parent=31 // pred_fallthru
          _
        // Predicated region
        $region49: #{multi_head_attention_forward.2} parent=31 // pred_check
          %p400 = pneg %p179
        $region50: #{multi_head_attention_forward.2} parent=31 // pred_check_branch
          %402 = sbr.rel (%p400) target = $region52
        $region51: #{multi_head_attention_forward.2} parent=31 // pred_region
          _
        $region52: #{multi_head_attention_forward.2} parent=31 // pred_fallthru
          _
      $region32: #{multi_head_attention_forward.2} parent=5 // pred_fallthru
        _
      %p403 = scmp.le.s32.totalorder 2, %s16
      // Predicated region
      $region53: #{multi_head_attention_forward.2} parent=5 // pred_check
        %p404 = pneg %p403
      $region54: #{multi_head_attention_forward.2} parent=5 // pred_check_branch
        %406 = sbr.rel (%p404) target = $region56
      $region55: #{multi_head_attention_forward.2} parent=5 // pred_region
        %s407 = ssub.s32 %s16, 2
        // Predicated region
        $region57: #{multi_head_attention_forward.2} parent=55 // pred_check
          %p408 = pneg %p129
        $region58: #{multi_head_attention_forward.2} parent=55 // pred_check_branch
          %410 = sbr.rel (%p408) target = $region60
        $region59: #{multi_head_attention_forward.2} parent=55 // pred_region
          %p411 = scmp.lt.s32.totalorder %s27, 1
          %s412 = scalar_select %p411, %s27, 1
          %p413 = scmp.lt.s32.totalorder %s28, 0
          %s414 = scalar_select %p413, %s28, 0
          %s415 = sadd.s32 %s414, %s412
          %s416 = smul.addr %s415, 4
          %s417 = scalar_lea.vmem %s3, %s416
        $region60: #{multi_head_attention_forward.2} parent=55 // pred_fallthru
          _
        // Predicated region
        $region61: #{multi_head_attention_forward.2} parent=55 // pred_check
          %p418 = pneg %p157
        $region62: #{multi_head_attention_forward.2} parent=55 // pred_check_branch
          %420 = sbr.rel (%p418) target = $region64
        $region63: #{multi_head_attention_forward.2} parent=55 // pred_region
          %p421 = scmp.lt.s32.totalorder %s27, 1
          %s422 = scalar_select %p421, %s27, 1
          %p423 = scmp.lt.s32.totalorder %s28, 0
          %s424 = scalar_select %p423, %s28, 0
          %s425 = sadd.s32 %s424, %s422
          %s426 = smul.addr %s425, 4
          %s427 = scalar_lea.vmem %s4, %s426
        $region64: #{multi_head_attention_forward.2} parent=55 // pred_fallthru
          _
        // Predicated region
        $region65: #{multi_head_attention_forward.2} parent=55 // pred_check
          %p428 = pneg %p185
        $region66: #{multi_head_attention_forward.2} parent=55 // pred_check_branch
          %430 = sbr.rel (%p428) target = $region68
        $region67: #{multi_head_attention_forward.2} parent=55 // pred_region
          %p431 = scmp.lt.s32.totalorder %s27, 1
          %s432 = scalar_select %p431, %s27, 1
          %p433 = scmp.lt.s32.totalorder %s28, 0
          %s434 = scalar_select %p433, %s28, 0
          %s435 = sadd.s32 %s434, %s432
          %s436 = smul.addr %s435, 4
          %s437 = scalar_lea.vmem %s5, %s436
        $region68: #{multi_head_attention_forward.2} parent=55 // pred_fallthru
          _
      $region56: #{multi_head_attention_forward.2} parent=5 // pred_fallthru
        _
    $region6: #{multi_head_attention_forward.2} parent=1 // loop_footer
      %s20 = sadd.s32 1, %s16
    $region7: #{multi_head_attention_forward.2} parent=1 // loop_footer_branch
      %15 = sbr.rel target = $region3
    $region8: #{multi_head_attention_forward.2} parent=1 // loop_exit
      _
    %438 = vsyncpa [#allocation3], 1
    %s439 = scalar_lea.sflag [#allocation3], 1
    %440 = vsyncpa %s439, 1
    %441 = vsyncpa [#allocation5], 1

</llo_original>
